<compile_context>
chip_gen: v7x
topology: tpu7x:2x2x1
jax: 0.10.0
libtpu: 0.0.40
codegen_flags: <defaults>
</compile_context>

<pallas_src>
import functools

import numpy as np

import jax
import jax.numpy as jnp
from jax import lax
from jax.experimental import pallas as pl
from jax.experimental.pallas import tpu as pltpu  # noqa: F401  (memory-space utils)

ENCODE_LENGTH = 16
HIDDEN = 64
BATCH = 2
# (H_in, W_in, C_in, C_out) for each conv(3x3, pad=1)+ReLU+maxpool(2x2) block.
LAYER_DIMS = ((16, 16, 3, 8), (8, 8, 8, 16), (4, 4, 16, 32))


# ---------------------------------------------------------------------------
# The single fused kernel
# ---------------------------------------------------------------------------
def _fused_cnn_kernel(
    x_ref,
    wb1_ref, bb1_ref, pr1_ref, sc1_ref,
    wb2_ref, bb2_ref, pr2_ref, sc2_ref,
    wb3_ref, bb3_ref, pr3_ref, sc3_ref,
    w6_ref, b6_ref, w7_ref, b7_ref, we_ref, be_ref,
    out_x_ref, out_h_ref, out_b_ref,
    *, batch, dims,
):
    wbs = (wb1_ref, wb2_ref, wb3_ref)
    bbs = (bb1_ref, bb2_ref, bb3_ref)
    prs = (pr1_ref, pr2_ref, pr3_ref)
    scs = (sc1_ref, sc2_ref, sc3_ref)

    # Batch-stacked, vertically padded activation slab (f32); halos are zero.
    act = x_ref[...]                                  # (batch*(H1+2), W1*C1)

    for l, (H, W, Cin, Cout) in enumerate(dims):
        Hp, Ho, Wo = H + 2, H // 2, W // 2
        Msc = batch * Hp - 2                          # conv-centre rows (whole stack)
        WoC = Wo * Cout
        last = (l + 1 == len(dims))
        Rout = Ho * batch if last else batch * (Ho + 2)

        # --- 3x3 conv (SAME) + bias + ReLU: three banded matmuls over the
        #     whole batch-stacked slab.  Vertical padding = zero halo rows,
        #     horizontal padding folded into the banded weights.
        conv = bbs[l][...]                            # (1, W*Cout) f32, broadcasts
        for di in range(3):
            conv = conv + jnp.dot(
                act[di:di + Msc, :].astype(jnp.bfloat16), wbs[l][di],
                preferred_element_type=jnp.float32)
        conv = jnp.maximum(conv, 0.0).astype(jnp.bfloat16)   # (Msc, W*Cout)

        # --- 2x2 / stride-2 max pool: one stacked row-selector dot + one
        #     stacked (128x128) column-selector dot, max over result halves.
        #     The row selector already emits the NEXT layer's padded row
        #     layout (its halo rows are all-zero selector rows -> zeros).
        rows2 = jnp.dot(prs[l][...], conv, preferred_element_type=jnp.float32)
        rows = jnp.maximum(rows2[:Rout], rows2[Rout:]).astype(jnp.bfloat16)
        cols2 = jnp.dot(rows, scs[l][...], preferred_element_type=jnp.float32)
        act = jnp.maximum(cols2[:, :WoC], cols2[:, WoC:])    # (Rout, Wo*Cout) f32

    # act: last layer pooled, rows grouped by pooled-row index ho:
    #   row = ho*batch + image, lane = w*Cout + c   -> (Ho*batch, Wo*Cout)
    Ho3 = dims[-1][0] // 2
    WoC3 = (dims[-1][1] // 2) * dims[-1][3]

    # --- vgg.classifier[:6]: Linear,ReLU,Dropout,Linear,ReLU,Dropout (eval) ---
    # fc6 as Ho block-matmuls straight off the pooled slab (no flatten store).
    x6 = b6_ref[...]                                  # (1, HIDDEN)
    for ho in range(Ho3):
        x6 = x6 + jnp.dot(
            act[ho * batch:(ho + 1) * batch, :].astype(jnp.bfloat16),
            w6_ref[ho * WoC3:(ho + 1) * WoC3, :],
            preferred_element_type=jnp.float32)
    x6 = jnp.maximum(x6, 0.0)
    x7 = jnp.maximum(
        jnp.dot(x6.astype(jnp.bfloat16), w7_ref[...],
                preferred_element_type=jnp.float32) + b7_ref[...], 0.0)
    out_x_ref[...] = x7.astype(out_x_ref.dtype)

    # --- fc_encode ---
    h = jnp.dot(x7.astype(jnp.bfloat16), we_ref[...],
                preferred_element_type=jnp.float32) + be_ref[...]
    out_h_ref[...] = h.astype(out_h_ref.dtype)

    # --- hash layer: per column, top N/2 (descending) -> +1, rest -> -1.
    #     2-D formulation: rank[i] = #{j : h[j] > h[i] or (h[j]==h[i] and j<i)}.
    row_id = lax.broadcasted_iota(jnp.int32, h.shape, 0)
    rank = jnp.zeros(h.shape, jnp.int32)
    for j in range(batch):                            # batch is tiny -> unrolled
        hj = h[j:j + 1, :]                            # (1, D), broadcasts
        beats = (hj > h) | ((hj == h) & (row_id > j))
        rank = rank + beats.astype(jnp.int32)
    out_b_ref[...] = jnp.where(rank < (batch // 2), 1.0, -1.0).astype(out_b_ref.dtype)


# ---------------------------------------------------------------------------
# Host-side weight repacking (done once, outside the hot path)
# ---------------------------------------------------------------------------
def _conv_banded(w, width):
    """(3,3,cin,cout) conv weight -> (3, W*cin, W*cout) banded weight with the
    horizontal SAME padding folded in (out-of-range taps are zero)."""
    _, _, cin, cout = w.shape
    out = np.zeros((3, width * cin, width * cout), np.float32)
    for di in range(3):
        for dj in range(3):
            for j in range(width):
                src = j + dj - 1
                if 0 <= src < width:
                    out[di, src * cin:(src + 1) * cin,
                        j * cout:(j + 1) * cout] = w[di, dj]
    return out


def _row_pool_selector(batch, height, last):
    """Merged (2*Rout, batch*(H+2)-2) 0/1 selector picking the even/odd conv
    rows of every image.  Non-last layers emit the next layer's padded row
    layout (halo rows are all-zero selector rows); the last layer emits rows
    grouped by pooled-row index (ho-major) for the fc6 block-matmuls."""
    hp, ho = height + 2, height // 2
    msc = batch * hp - 2
    if last:
        rout = ho * batch
        dst = lambda i, r: r * batch + i
    else:
        hop = ho + 2
        rout = batch * hop
        dst = lambda i, r: i * hop + 1 + r
    pr = np.zeros((2 * rout, msc), np.float32)
    for i in range(batch):
        for r in range(ho):
            pr[dst(i, r), i * hp + 2 * r] = 1.0
            pr[rout + dst(i, r), i * hp + 2 * r + 1] = 1.0
    return pr


def _col_pool_selector(width, cout):
    """Merged (W*cout, 2*(W/2)*cout) 0/1 selector picking even/odd columns."""
    wo = width // 2
    sc = np.zeros((width * cout, 2 * wo * cout), np.float32)
    for j in range(wo):
        for co in range(cout):
            sc[(2 * j) * cout + co, j * cout + co] = 1.0
            sc[(2 * j + 1) * cout + co, wo * cout + j * cout + co] = 1.0
    return sc


def _linear_init(key, fan_in, fan_out):
    bound = 1.0 / float(fan_in) ** 0.5
    kw, kb = jax.random.split(key)
    w = jax.random.uniform(kw, (fan_in, fan_out), jnp.float32, -bound, bound)
    b = jax.random.uniform(kb, (1, fan_out), jnp.float32, -bound, bound)
    return w, b


def init_params(key):
    """Deterministic synthetic weights (down-scaled VGG-like dims), raw layout."""
    keys = jax.random.split(key, len(LAYER_DIMS) + 3)
    features = []
    for k, (_, _, cin, cout) in zip(keys[:len(LAYER_DIMS)], LAYER_DIMS):
        bound = 1.0 / float(9 * cin) ** 0.5
        kw, kb = jax.random.split(k)
        w = jax.random.uniform(kw, (3, 3, cin, cout), jnp.float32, -bound, bound)
        b = jax.random.uniform(kb, (cout,), jnp.float32, -bound, bound)
        features.append((w, b))
    ho, wo, c_last = LAYER_DIMS[-1][0] // 2, LAYER_DIMS[-1][1] // 2, LAYER_DIMS[-1][3]
    flat_dim = c_last * ho * wo
    fc6 = _linear_init(keys[-3], flat_dim, HIDDEN)
    fc7 = _linear_init(keys[-2], HIDDEN, HIDDEN)
    enc = _linear_init(keys[-1], HIDDEN, ENCODE_LENGTH)
    return {"features": features, "fc6": fc6, "fc7": fc7, "enc": enc}


def prepare_params(raw, batch):
    """Repack raw weights into the fused-kernel layout (host side, once).
    All matmul weights / selectors are cast to bf16; biases stay f32."""
    ndims = len(LAYER_DIMS)
    conv = []
    for l, ((w, b), (H, W, _, cout)) in enumerate(zip(raw["features"], LAYER_DIMS)):
        wnp = np.asarray(jax.device_get(w))
        bnp = np.asarray(jax.device_get(b)).reshape(-1)
        conv.append((
            jnp.asarray(_conv_banded(wnp, W), jnp.bfloat16),
            jnp.asarray(np.tile(bnp, W)[None, :], jnp.float32),     # (1, W*cout)
            jnp.asarray(_row_pool_selector(batch, H, last=(l + 1 == ndims)),
                        jnp.bfloat16),
            jnp.asarray(_col_pool_selector(W, cout), jnp.bfloat16),
        ))
    # fc6 rows are indexed (c, h, w) by PyTorch's x.view(N, -1) on NCHW; our
    # pooled features are laid out (h, w, c) -> permute the weight rows so that
    # row block h*(Wo*C) matches pooled row ho of every image.
    ho, wo, c_last = LAYER_DIMS[-1][0] // 2, LAYER_DIMS[-1][1] // 2, LAYER_DIMS[-1][3]
    perm = np.zeros(c_last * ho * wo, np.int32)
    for c in range(c_last):
        for h in range(ho):
            for w in range(wo):
                perm[h * wo * c_last + w * c_last + c] = c * ho * wo + h * wo + w
    (w6, b6), (w7, b7), (we, be) = raw["fc6"], raw["fc7"], raw["enc"]
    w6p = jnp.asarray(np.asarray(jax.device_get(w6))[perm, :], jnp.bfloat16)
    return {
        "conv": conv,
        "fc6": (w6p, jnp.asarray(b6, jnp.float32)),
        "fc7": (jnp.asarray(w7, jnp.bfloat16), jnp.asarray(b7, jnp.float32)),
        "enc": (jnp.asarray(we, jnp.bfloat16), jnp.asarray(be, jnp.float32)),
    }


# ---------------------------------------------------------------------------
# Forward pass (single pallas_call)
# ---------------------------------------------------------------------------
def _cost_estimate(batch, args, out_shapes):
    flops = 0
    ndims = len(LAYER_DIMS)
    for l, (H, W, Cin, Cout) in enumerate(LAYER_DIMS):
        hp, ho, wo = H + 2, H // 2, W // 2
        msc = batch * hp - 2
        rout = ho * batch if l + 1 == ndims else batch * (ho + 2)
        flops += 2 * 3 * msc * (W * Cin) * (W * Cout)          # conv bands
        flops += 2 * (2 * rout) * msc * (W * Cout)             # row pool
        flops += 2 * rout * (W * Cout) * (2 * wo * Cout)       # col pool
    flat = (LAYER_DIMS[-1][0] // 2) * (LAYER_DIMS[-1][1] // 2) * LAYER_DIMS[-1][3]
    flops += 2 * batch * (flat * HIDDEN + HIDDEN * HIDDEN + HIDDEN * ENCODE_LENGTH)
    nbytes = sum(int(np.prod(a.shape)) * np.dtype(a.dtype).itemsize for a in args)
    nbytes += sum(int(np.prod(s.shape)) * np.dtype(s.dtype).itemsize for s in out_shapes)
    return pl.CostEstimate(flops=int(flops), transcendentals=0,
                           bytes_accessed=int(nbytes))


def cnn_forward(prepared, x_nchw):
    n, c, hgt, wdt = x_nchw.shape
    H1, W1, C1, _ = LAYER_DIMS[0]
    assert (hgt, wdt, c) == (H1, W1, C1)
    # Boundary layout plumbing only: NCHW -> one batch-stacked [n*(H+2), W*C]
    # slab with zero top/bottom halo rows per image (the horizontal SAME
    # padding is folded into the banded conv weights, so lanes stay dense).
    x_img = jnp.transpose(x_nchw, (0, 2, 3, 1)).reshape(n, hgt, wdt * c)
    x_pad = jnp.pad(x_img, ((0, 0), (1, 1), (0, 0)))
    x_in = x_pad.reshape(n * (hgt + 2), wdt * c).astype(jnp.float32)

    conv_args = []
    for layer in prepared["conv"]:
        conv_args.extend(layer)
    (w6, b6), (w7, b7), (we, be) = prepared["fc6"], prepared["fc7"], prepared["enc"]
    args = (x_in, *conv_args, w6, b6, w7, b7, we, be)

    out_shapes = (
        jax.ShapeDtypeStruct((n, HIDDEN), jnp.float32),
        jax.ShapeDtypeStruct((n, ENCODE_LENGTH), jnp.float32),
        jax.ShapeDtypeStruct((n, ENCODE_LENGTH), jnp.float32),
    )
    kernel = functools.partial(_fused_cnn_kernel, batch=n, dims=LAYER_DIMS)
    out_x, out_h, out_b = pl.pallas_call(
        kernel,
        out_shape=out_shapes,
        cost_estimate=_cost_estimate(n, args, out_shapes),
    )(*args)
    return out_x, out_h, out_b


# ---------------------------------------------------------------------------
# Pure-JAX reference (for self-checking)
# ---------------------------------------------------------------------------
def _reference_forward(raw, x_nchw):
    x = jnp.transpose(x_nchw, (0, 2, 3, 1)).astype(jnp.float32)     # NHWC
    for w, b in raw["features"]:
        x = lax.conv_general_dilated(x, w, (1, 1), "SAME",
                                     dimension_numbers=("NHWC", "HWIO", "NHWC"))
        x = jnp.maximum(x + b, 0.0)
        x = lax.reduce_window(x, -jnp.inf, lax.max, (1, 2, 2, 1), (1, 2, 2, 1), "VALID")
    n = x.shape[0]
    feat = jnp.transpose(x, (0, 3, 1, 2)).reshape(n, -1)            # (c, h, w) flatten
    w6, b6 = raw["fc6"]; w7, b7 = raw["fc7"]; we, be = raw["enc"]
    xcls = jnp.maximum(feat @ w6 + b6, 0.0)
    xcls = jnp.maximum(xcls @ w7 + b7, 0.0)
    h = xcls @ we + be
    order = jnp.argsort(-h, axis=0)
    ranks = jnp.argsort(order, axis=0)
    b_out = jnp.where(ranks < (n // 2), 1.0, -1.0)
    return xcls, h, b_out


if __name__ == "__main__":
    root = jax.random.PRNGKey(0)
    k_params, k_x = jax.random.split(root)
    raw_params = init_params(k_params)
    params = prepare_params(raw_params, BATCH)
    x = jax.random.normal(k_x, (BATCH, 3, 16, 16), jnp.float32)     # NCHW, like PyTorch

    fwd = jax.jit(cnn_forward)
    feat, h, b = fwd(params, x)
    jax.block_until_ready((feat, h, b))

    assert feat.shape == (BATCH, HIDDEN)
    assert h.shape == (BATCH, ENCODE_LENGTH)
    assert b.shape == (BATCH, ENCODE_LENGTH)

    # Correctness self-check against a pure-JAX f32 reference (kernel weights
    # are bf16, hence the slightly loosened tolerance).
    ref_x, ref_h, _ = _reference_forward(raw_params, x)
    np.testing.assert_allclose(np.asarray(feat), np.asarray(ref_x), rtol=5e-2, atol=2e-2)
    np.testing.assert_allclose(np.asarray(h), np.asarray(ref_h), rtol=5e-2, atol=2e-2)
    # Hash semantics checked on the kernel's own h (avoids tie ambiguity).
    order = jnp.argsort(-h, axis=0)
    ranks = jnp.argsort(order, axis=0)
    b_expected = jnp.where(ranks < (BATCH // 2), 1.0, -1.0)
    assert np.array_equal(np.asarray(b), np.asarray(b_expected))

    print("KERNEL_OK")
</pallas_src>

<mosaic_0001>
module attributes {stable_mosaic.version = 11 : i64} {
  func.func @_fused_cnn_kernel(%arg0: memref<36x48xf32, #tpu.memory_space<vmem>>, %arg1: memref<3x48x128xbf16, #tpu.memory_space<vmem>>, %arg2: memref<1x128xf32, #tpu.memory_space<vmem>>, %arg3: memref<40x34xbf16, #tpu.memory_space<vmem>>, %arg4: memref<128x128xbf16, #tpu.memory_space<vmem>>, %arg5: memref<3x64x128xbf16, #tpu.memory_space<vmem>>, %arg6: memref<1x128xf32, #tpu.memory_space<vmem>>, %arg7: memref<24x18xbf16, #tpu.memory_space<vmem>>, %arg8: memref<128x128xbf16, #tpu.memory_space<vmem>>, %arg9: memref<3x64x128xbf16, #tpu.memory_space<vmem>>, %arg10: memref<1x128xf32, #tpu.memory_space<vmem>>, %arg11: memref<8x10xbf16, #tpu.memory_space<vmem>>, %arg12: memref<128x128xbf16, #tpu.memory_space<vmem>>, %arg13: memref<128x64xbf16, #tpu.memory_space<vmem>>, %arg14: memref<1x64xf32, #tpu.memory_space<vmem>>, %arg15: memref<64x64xbf16, #tpu.memory_space<vmem>>, %arg16: memref<1x64xf32, #tpu.memory_space<vmem>>, %arg17: memref<64x16xbf16, #tpu.memory_space<vmem>>, %arg18: memref<1x16xf32, #tpu.memory_space<vmem>>, %arg19: memref<2x64xf32, #tpu.memory_space<vmem>>, %arg20: memref<2x16xf32, #tpu.memory_space<vmem>>, %arg21: memref<2x16xf32, #tpu.memory_space<vmem>>) attributes {dimension_semantics = [], scalar_prefetch = 0 : i64, scratch_operands = 0 : i64, tpu.core_type = #tpu.core_type<tc>} {
    %c0 = arith.constant 0 : index
    %c0_0 = arith.constant 0 : index
    %0 = vector.load %arg0[%c0, %c0_0] : memref<36x48xf32, #tpu.memory_space<vmem>>, vector<36x48xf32>
    %c0_1 = arith.constant 0 : index
    %c0_2 = arith.constant 0 : index
    %1 = vector.load %arg2[%c0_1, %c0_2] : memref<1x128xf32, #tpu.memory_space<vmem>>, vector<1x128xf32>
    %2 = vector.extract_strided_slice %0 {offsets = [0, 0], sizes = [34, 48], strides = [1, 1]} : vector<36x48xf32> to vector<34x48xf32>
    %3 = arith.truncf %2 : vector<34x48xf32> to vector<34x48xbf16>
    %c0_3 = arith.constant 0 : index
    %c0_4 = arith.constant 0 : index
    %c0_5 = arith.constant 0 : index
    %4 = vector.load %arg1[%c0_3, %c0_4, %c0_5] : memref<3x48x128xbf16, #tpu.memory_space<vmem>>, vector<1x48x128xbf16>
    %5 = vector.shape_cast %4 : vector<1x48x128xbf16> to vector<48x128xbf16>
    %cst = arith.constant dense<0.000000e+00> : vector<34x128xf32>
    %6 = tpu.matmul %3, %5, %cst {dimension_numbers = #tpu.dot_dimension_numbers<[1], [0], [0], [1], [0, 0, 1, 1], [], []>} : vector<34x48xbf16>, vector<48x128xbf16>, vector<34x128xf32> -> vector<34x128xf32>
    %7 = vector.broadcast %1 : vector<1x128xf32> to vector<34x128xf32>
    %8 = arith.addf %7, %6 : vector<34x128xf32>
    %9 = vector.extract_strided_slice %0 {offsets = [1, 0], sizes = [34, 48], strides = [1, 1]} : vector<36x48xf32> to vector<34x48xf32>
    %10 = arith.truncf %9 : vector<34x48xf32> to vector<34x48xbf16>
    %c1 = arith.constant 1 : index
    %c0_6 = arith.constant 0 : index
    %c0_7 = arith.constant 0 : index
    %11 = vector.load %arg1[%c1, %c0_6, %c0_7] : memref<3x48x128xbf16, #tpu.memory_space<vmem>>, vector<1x48x128xbf16>
    %12 = vector.shape_cast %11 : vector<1x48x128xbf16> to vector<48x128xbf16>
    %cst_8 = arith.constant dense<0.000000e+00> : vector<34x128xf32>
    %13 = tpu.matmul %10, %12, %cst_8 {dimension_numbers = #tpu.dot_dimension_numbers<[1], [0], [0], [1], [0, 0, 1, 1], [], []>} : vector<34x48xbf16>, vector<48x128xbf16>, vector<34x128xf32> -> vector<34x128xf32>
    %14 = arith.addf %8, %13 : vector<34x128xf32>
    %15 = vector.extract_strided_slice %0 {offsets = [2, 0], sizes = [34, 48], strides = [1, 1]} : vector<36x48xf32> to vector<34x48xf32>
    %16 = arith.truncf %15 : vector<34x48xf32> to vector<34x48xbf16>
    %c2 = arith.constant 2 : index
    %c0_9 = arith.constant 0 : index
    %c0_10 = arith.constant 0 : index
    %17 = vector.load %arg1[%c2, %c0_9, %c0_10] : memref<3x48x128xbf16, #tpu.memory_space<vmem>>, vector<1x48x128xbf16>
    %18 = vector.shape_cast %17 : vector<1x48x128xbf16> to vector<48x128xbf16>
    %cst_11 = arith.constant dense<0.000000e+00> : vector<34x128xf32>
    %19 = tpu.matmul %16, %18, %cst_11 {dimension_numbers = #tpu.dot_dimension_numbers<[1], [0], [0], [1], [0, 0, 1, 1], [], []>} : vector<34x48xbf16>, vector<48x128xbf16>, vector<34x128xf32> -> vector<34x128xf32>
    %20 = arith.addf %14, %19 : vector<34x128xf32>
    %cst_12 = arith.constant 0.000000e+00 : f32
    %21 = vector.broadcast %cst_12 : f32 to vector<34x128xf32>
    %22 = arith.maximumf %20, %21 : vector<34x128xf32>
    %23 = arith.truncf %22 : vector<34x128xf32> to vector<34x128xbf16>
    %c0_13 = arith.constant 0 : index
    %c0_14 = arith.constant 0 : index
    %24 = vector.load %arg3[%c0_13, %c0_14] : memref<40x34xbf16, #tpu.memory_space<vmem>>, vector<40x34xbf16>
    %cst_15 = arith.constant dense<0.000000e+00> : vector<40x128xf32>
    %25 = tpu.matmul %24, %23, %cst_15 {dimension_numbers = #tpu.dot_dimension_numbers<[1], [0], [0], [1], [0, 0, 1, 1], [], []>} : vector<40x34xbf16>, vector<34x128xbf16>, vector<40x128xf32> -> vector<40x128xf32>
    %26 = vector.extract_strided_slice %25 {offsets = [0, 0], sizes = [20, 128], strides = [1, 1]} : vector<40x128xf32> to vector<20x128xf32>
    %27 = vector.extract_strided_slice %25 {offsets = [20, 0], sizes = [20, 128], strides = [1, 1]} : vector<40x128xf32> to vector<20x128xf32>
    %28 = arith.maximumf %26, %27 : vector<20x128xf32>
    %29 = arith.truncf %28 : vector<20x128xf32> to vector<20x128xbf16>
    %c0_16 = arith.constant 0 : index
    %c0_17 = arith.constant 0 : index
    %30 = vector.load %arg4[%c0_16, %c0_17] : memref<128x128xbf16, #tpu.memory_space<vmem>>, vector<128x128xbf16>
    %cst_18 = arith.constant dense<0.000000e+00> : vector<20x128xf32>
    %31 = tpu.matmul %29, %30, %cst_18 {dimension_numbers = #tpu.dot_dimension_numbers<[1], [0], [0], [1], [0, 0, 1, 1], [], []>} : vector<20x128xbf16>, vector<128x128xbf16>, vector<20x128xf32> -> vector<20x128xf32>
    %32 = vector.extract_strided_slice %31 {offsets = [0, 0], sizes = [20, 64], strides = [1, 1]} : vector<20x128xf32> to vector<20x64xf32>
    %33 = vector.extract_strided_slice %31 {offsets = [0, 64], sizes = [20, 64], strides = [1, 1]} : vector<20x128xf32> to vector<20x64xf32>
    %34 = arith.maximumf %32, %33 : vector<20x64xf32>
    %c0_19 = arith.constant 0 : index
    %c0_20 = arith.constant 0 : index
    %35 = vector.load %arg6[%c0_19, %c0_20] : memref<1x128xf32, #tpu.memory_space<vmem>>, vector<1x128xf32>
    %36 = vector.extract_strided_slice %34 {offsets = [0, 0], sizes = [18, 64], strides = [1, 1]} : vector<20x64xf32> to vector<18x64xf32>
    %37 = arith.truncf %36 : vector<18x64xf32> to vector<18x64xbf16>
    %c0_21 = arith.constant 0 : index
    %c0_22 = arith.constant 0 : index
    %c0_23 = arith.constant 0 : index
    %38 = vector.load %arg5[%c0_21, %c0_22, %c0_23] : memref<3x64x128xbf16, #tpu.memory_space<vmem>>, vector<1x64x128xbf16>
    %39 = vector.shape_cast %38 : vector<1x64x128xbf16> to vector<64x128xbf16>
    %cst_24 = arith.constant dense<0.000000e+00> : vector<18x128xf32>
    %40 = tpu.matmul %37, %39, %cst_24 {dimension_numbers = #tpu.dot_dimension_numbers<[1], [0], [0], [1], [0, 0, 1, 1], [], []>} : vector<18x64xbf16>, vector<64x128xbf16>, vector<18x128xf32> -> vector<18x128xf32>
    %41 = vector.broadcast %35 : vector<1x128xf32> to vector<18x128xf32>
    %42 = arith.addf %41, %40 : vector<18x128xf32>
    %43 = vector.extract_strided_slice %34 {offsets = [1, 0], sizes = [18, 64], strides = [1, 1]} : vector<20x64xf32> to vector<18x64xf32>
    %44 = arith.truncf %43 : vector<18x64xf32> to vector<18x64xbf16>
    %c1_25 = arith.constant 1 : index
    %c0_26 = arith.constant 0 : index
    %c0_27 = arith.constant 0 : index
    %45 = vector.load %arg5[%c1_25, %c0_26, %c0_27] : memref<3x64x128xbf16, #tpu.memory_space<vmem>>, vector<1x64x128xbf16>
    %46 = vector.shape_cast %45 : vector<1x64x128xbf16> to vector<64x128xbf16>
    %cst_28 = arith.constant dense<0.000000e+00> : vector<18x128xf32>
    %47 = tpu.matmul %44, %46, %cst_28 {dimension_numbers = #tpu.dot_dimension_numbers<[1], [0], [0], [1], [0, 0, 1, 1], [], []>} : vector<18x64xbf16>, vector<64x128xbf16>, vector<18x128xf32> -> vector<18x128xf32>
    %48 = arith.addf %42, %47 : vector<18x128xf32>
    %49 = vector.extract_strided_slice %34 {offsets = [2, 0], sizes = [18, 64], strides = [1, 1]} : vector<20x64xf32> to vector<18x64xf32>
    %50 = arith.truncf %49 : vector<18x64xf32> to vector<18x64xbf16>
    %c2_29 = arith.constant 2 : index
    %c0_30 = arith.constant 0 : index
    %c0_31 = arith.constant 0 : index
    %51 = vector.load %arg5[%c2_29, %c0_30, %c0_31] : memref<3x64x128xbf16, #tpu.memory_space<vmem>>, vector<1x64x128xbf16>
    %52 = vector.shape_cast %51 : vector<1x64x128xbf16> to vector<64x128xbf16>
    %cst_32 = arith.constant dense<0.000000e+00> : vector<18x128xf32>
    %53 = tpu.matmul %50, %52, %cst_32 {dimension_numbers = #tpu.dot_dimension_numbers<[1], [0], [0], [1], [0, 0, 1, 1], [], []>} : vector<18x64xbf16>, vector<64x128xbf16>, vector<18x128xf32> -> vector<18x128xf32>
    %54 = arith.addf %48, %53 : vector<18x128xf32>
    %cst_33 = arith.constant 0.000000e+00 : f32
    %55 = vector.broadcast %cst_33 : f32 to vector<18x128xf32>
    %56 = arith.maximumf %54, %55 : vector<18x128xf32>
    %57 = arith.truncf %56 : vector<18x128xf32> to vector<18x128xbf16>
    %c0_34 = arith.constant 0 : index
    %c0_35 = arith.constant 0 : index
    %58 = vector.load %arg7[%c0_34, %c0_35] : memref<24x18xbf16, #tpu.memory_space<vmem>>, vector<24x18xbf16>
    %cst_36 = arith.constant dense<0.000000e+00> : vector<24x128xf32>
    %59 = tpu.matmul %58, %57, %cst_36 {dimension_numbers = #tpu.dot_dimension_numbers<[1], [0], [0], [1], [0, 0, 1, 1], [], []>} : vector<24x18xbf16>, vector<18x128xbf16>, vector<24x128xf32> -> vector<24x128xf32>
    %60 = vector.extract_strided_slice %59 {offsets = [0, 0], sizes = [12, 128], strides = [1, 1]} : vector<24x128xf32> to vector<12x128xf32>
    %61 = vector.extract_strided_slice %59 {offsets = [12, 0], sizes = [12, 128], strides = [1, 1]} : vector<24x128xf32> to vector<12x128xf32>
    %62 = arith.maximumf %60, %61 : vector<12x128xf32>
    %63 = arith.truncf %62 : vector<12x128xf32> to vector<12x128xbf16>
    %c0_37 = arith.constant 0 : index
    %c0_38 = arith.constant 0 : index
    %64 = vector.load %arg8[%c0_37, %c0_38] : memref<128x128xbf16, #tpu.memory_space<vmem>>, vector<128x128xbf16>
    %cst_39 = arith.constant dense<0.000000e+00> : vector<12x128xf32>
    %65 = tpu.matmul %63, %64, %cst_39 {dimension_numbers = #tpu.dot_dimension_numbers<[1], [0], [0], [1], [0, 0, 1, 1], [], []>} : vector<12x128xbf16>, vector<128x128xbf16>, vector<12x128xf32> -> vector<12x128xf32>
    %66 = vector.extract_strided_slice %65 {offsets = [0, 0], sizes = [12, 64], strides = [1, 1]} : vector<12x128xf32> to vector<12x64xf32>
    %67 = vector.extract_strided_slice %65 {offsets = [0, 64], sizes = [12, 64], strides = [1, 1]} : vector<12x128xf32> to vector<12x64xf32>
    %68 = arith.maximumf %66, %67 : vector<12x64xf32>
    %c0_40 = arith.constant 0 : index
    %c0_41 = arith.constant 0 : index
    %69 = vector.load %arg10[%c0_40, %c0_41] : memref<1x128xf32, #tpu.memory_space<vmem>>, vector<1x128xf32>
    %70 = vector.extract_strided_slice %68 {offsets = [0, 0], sizes = [10, 64], strides = [1, 1]} : vector<12x64xf32> to vector<10x64xf32>
    %71 = arith.truncf %70 : vector<10x64xf32> to vector<10x64xbf16>
    %c0_42 = arith.constant 0 : index
    %c0_43 = arith.constant 0 : index
    %c0_44 = arith.constant 0 : index
    %72 = vector.load %arg9[%c0_42, %c0_43, %c0_44] : memref<3x64x128xbf16, #tpu.memory_space<vmem>>, vector<1x64x128xbf16>
    %73 = vector.shape_cast %72 : vector<1x64x128xbf16> to vector<64x128xbf16>
    %cst_45 = arith.constant dense<0.000000e+00> : vector<10x128xf32>
    %74 = tpu.matmul %71, %73, %cst_45 {dimension_numbers = #tpu.dot_dimension_numbers<[1], [0], [0], [1], [0, 0, 1, 1], [], []>} : vector<10x64xbf16>, vector<64x128xbf16>, vector<10x128xf32> -> vector<10x128xf32>
    %75 = vector.broadcast %69 : vector<1x128xf32> to vector<10x128xf32>
    %76 = arith.addf %75, %74 : vector<10x128xf32>
    %77 = vector.extract_strided_slice %68 {offsets = [1, 0], sizes = [10, 64], strides = [1, 1]} : vector<12x64xf32> to vector<10x64xf32>
    %78 = arith.truncf %77 : vector<10x64xf32> to vector<10x64xbf16>
    %c1_46 = arith.constant 1 : index
    %c0_47 = arith.constant 0 : index
    %c0_48 = arith.constant 0 : index
    %79 = vector.load %arg9[%c1_46, %c0_47, %c0_48] : memref<3x64x128xbf16, #tpu.memory_space<vmem>>, vector<1x64x128xbf16>
    %80 = vector.shape_cast %79 : vector<1x64x128xbf16> to vector<64x128xbf16>
    %cst_49 = arith.constant dense<0.000000e+00> : vector<10x128xf32>
    %81 = tpu.matmul %78, %80, %cst_49 {dimension_numbers = #tpu.dot_dimension_numbers<[1], [0], [0], [1], [0, 0, 1, 1], [], []>} : vector<10x64xbf16>, vector<64x128xbf16>, vector<10x128xf32> -> vector<10x128xf32>
    %82 = arith.addf %76, %81 : vector<10x128xf32>
    %83 = vector.extract_strided_slice %68 {offsets = [2, 0], sizes = [10, 64], strides = [1, 1]} : vector<12x64xf32> to vector<10x64xf32>
    %84 = arith.truncf %83 : vector<10x64xf32> to vector<10x64xbf16>
    %c2_50 = arith.constant 2 : index
    %c0_51 = arith.constant 0 : index
    %c0_52 = arith.constant 0 : index
    %85 = vector.load %arg9[%c2_50, %c0_51, %c0_52] : memref<3x64x128xbf16, #tpu.memory_space<vmem>>, vector<1x64x128xbf16>
    %86 = vector.shape_cast %85 : vector<1x64x128xbf16> to vector<64x128xbf16>
    %cst_53 = arith.constant dense<0.000000e+00> : vector<10x128xf32>
    %87 = tpu.matmul %84, %86, %cst_53 {dimension_numbers = #tpu.dot_dimension_numbers<[1], [0], [0], [1], [0, 0, 1, 1], [], []>} : vector<10x64xbf16>, vector<64x128xbf16>, vector<10x128xf32> -> vector<10x128xf32>
    %88 = arith.addf %82, %87 : vector<10x128xf32>
    %cst_54 = arith.constant 0.000000e+00 : f32
    %89 = vector.broadcast %cst_54 : f32 to vector<10x128xf32>
    %90 = arith.maximumf %88, %89 : vector<10x128xf32>
    %91 = arith.truncf %90 : vector<10x128xf32> to vector<10x128xbf16>
    %c0_55 = arith.constant 0 : index
    %c0_56 = arith.constant 0 : index
    %92 = vector.load %arg11[%c0_55, %c0_56] : memref<8x10xbf16, #tpu.memory_space<vmem>>, vector<8x10xbf16>
    %cst_57 = arith.constant dense<0.000000e+00> : vector<8x128xf32>
    %93 = tpu.matmul %92, %91, %cst_57 {dimension_numbers = #tpu.dot_dimension_numbers<[1], [0], [0], [1], [0, 0, 1, 1], [], []>} : vector<8x10xbf16>, vector<10x128xbf16>, vector<8x128xf32> -> vector<8x128xf32>
    %94 = vector.extract_strided_slice %93 {offsets = [0, 0], sizes = [4, 128], strides = [1, 1]} : vector<8x128xf32> to vector<4x128xf32>
    %95 = vector.extract_strided_slice %93 {offsets = [4, 0], sizes = [4, 128], strides = [1, 1]} : vector<8x128xf32> to vector<4x128xf32>
    %96 = arith.maximumf %94, %95 : vector<4x128xf32>
    %97 = arith.truncf %96 : vector<4x128xf32> to vector<4x128xbf16>
    %c0_58 = arith.constant 0 : index
    %c0_59 = arith.constant 0 : index
    %98 = vector.load %arg12[%c0_58, %c0_59] : memref<128x128xbf16, #tpu.memory_space<vmem>>, vector<128x128xbf16>
    %cst_60 = arith.constant dense<0.000000e+00> : vector<4x128xf32>
    %99 = tpu.matmul %97, %98, %cst_60 {dimension_numbers = #tpu.dot_dimension_numbers<[1], [0], [0], [1], [0, 0, 1, 1], [], []>} : vector<4x128xbf16>, vector<128x128xbf16>, vector<4x128xf32> -> vector<4x128xf32>
    %100 = vector.extract_strided_slice %99 {offsets = [0, 0], sizes = [4, 64], strides = [1, 1]} : vector<4x128xf32> to vector<4x64xf32>
    %101 = vector.extract_strided_slice %99 {offsets = [0, 64], sizes = [4, 64], strides = [1, 1]} : vector<4x128xf32> to vector<4x64xf32>
    %102 = arith.maximumf %100, %101 : vector<4x64xf32>
    %c0_61 = arith.constant 0 : index
    %c0_62 = arith.constant 0 : index
    %103 = vector.load %arg14[%c0_61, %c0_62] : memref<1x64xf32, #tpu.memory_space<vmem>>, vector<1x64xf32>
    %104 = vector.extract_strided_slice %102 {offsets = [0, 0], sizes = [2, 64], strides = [1, 1]} : vector<4x64xf32> to vector<2x64xf32>
    %105 = arith.truncf %104 : vector<2x64xf32> to vector<2x64xbf16>
    %c0_63 = arith.constant 0 : index
    %c0_64 = arith.constant 0 : index
    %106 = vector.load %arg13[%c0_63, %c0_64] : memref<128x64xbf16, #tpu.memory_space<vmem>>, vector<64x64xbf16>
    %cst_65 = arith.constant dense<0.000000e+00> : vector<2x64xf32>
    %107 = tpu.matmul %105, %106, %cst_65 {dimension_numbers = #tpu.dot_dimension_numbers<[1], [0], [0], [1], [0, 0, 1, 1], [], []>} : vector<2x64xbf16>, vector<64x64xbf16>, vector<2x64xf32> -> vector<2x64xf32>
    %108 = vector.broadcast %103 : vector<1x64xf32> to vector<2x64xf32>
    %109 = arith.addf %108, %107 : vector<2x64xf32>
    %110 = vector.extract_strided_slice %102 {offsets = [2, 0], sizes = [2, 64], strides = [1, 1]} : vector<4x64xf32> to vector<2x64xf32>
    %111 = arith.truncf %110 : vector<2x64xf32> to vector<2x64xbf16>
    %c64 = arith.constant 64 : index
    %c0_66 = arith.constant 0 : index
    %112 = vector.load %arg13[%c64, %c0_66] : memref<128x64xbf16, #tpu.memory_space<vmem>>, vector<64x64xbf16>
    %cst_67 = arith.constant dense<0.000000e+00> : vector<2x64xf32>
    %113 = tpu.matmul %111, %112, %cst_67 {dimension_numbers = #tpu.dot_dimension_numbers<[1], [0], [0], [1], [0, 0, 1, 1], [], []>} : vector<2x64xbf16>, vector<64x64xbf16>, vector<2x64xf32> -> vector<2x64xf32>
    %114 = arith.addf %109, %113 : vector<2x64xf32>
    %cst_68 = arith.constant 0.000000e+00 : f32
    %115 = vector.broadcast %cst_68 : f32 to vector<2x64xf32>
    %116 = arith.maximumf %114, %115 : vector<2x64xf32>
    %117 = arith.truncf %116 : vector<2x64xf32> to vector<2x64xbf16>
    %c0_69 = arith.constant 0 : index
    %c0_70 = arith.constant 0 : index
    %118 = vector.load %arg15[%c0_69, %c0_70] : memref<64x64xbf16, #tpu.memory_space<vmem>>, vector<64x64xbf16>
    %cst_71 = arith.constant dense<0.000000e+00> : vector<2x64xf32>
    %119 = tpu.matmul %117, %118, %cst_71 {dimension_numbers = #tpu.dot_dimension_numbers<[1], [0], [0], [1], [0, 0, 1, 1], [], []>} : vector<2x64xbf16>, vector<64x64xbf16>, vector<2x64xf32> -> vector<2x64xf32>
    %c0_72 = arith.constant 0 : index
    %c0_73 = arith.constant 0 : index
    %120 = vector.load %arg16[%c0_72, %c0_73] : memref<1x64xf32, #tpu.memory_space<vmem>>, vector<1x64xf32>
    %121 = vector.broadcast %120 : vector<1x64xf32> to vector<2x64xf32>
    %122 = arith.addf %119, %121 : vector<2x64xf32>
    %cst_74 = arith.constant 0.000000e+00 : f32
    %123 = vector.broadcast %cst_74 : f32 to vector<2x64xf32>
    %124 = arith.maximumf %122, %123 : vector<2x64xf32>
    %c0_75 = arith.constant 0 : index
    %c0_76 = arith.constant 0 : index
    %125 = vector.load %arg19[%c0_75, %c0_76] : memref<2x64xf32, #tpu.memory_space<vmem>>, vector<2x64xf32>
    tpu.vector_store %arg19[%c0_75, %c0_76], %124 {strides = array<i32>} : memref<2x64xf32, #tpu.memory_space<vmem>>, vector<2x64xf32>,
    %126 = arith.truncf %124 : vector<2x64xf32> to vector<2x64xbf16>
    %c0_77 = arith.constant 0 : index
    %c0_78 = arith.constant 0 : index
    %127 = vector.load %arg17[%c0_77, %c0_78] : memref<64x16xbf16, #tpu.memory_space<vmem>>, vector<64x16xbf16>
    %cst_79 = arith.constant dense<0.000000e+00> : vector<2x16xf32>
    %128 = tpu.matmul %126, %127, %cst_79 {dimension_numbers = #tpu.dot_dimension_numbers<[1], [0], [0], [1], [0, 0, 1, 1], [], []>} : vector<2x64xbf16>, vector<64x16xbf16>, vector<2x16xf32> -> vector<2x16xf32>
    %c0_80 = arith.constant 0 : index
    %c0_81 = arith.constant 0 : index
    %129 = vector.load %arg18[%c0_80, %c0_81] : memref<1x16xf32, #tpu.memory_space<vmem>>, vector<1x16xf32>
    %130 = vector.broadcast %129 : vector<1x16xf32> to vector<2x16xf32>
    %131 = arith.addf %128, %130 : vector<2x16xf32>
    %c0_82 = arith.constant 0 : index
    %c0_83 = arith.constant 0 : index
    %132 = vector.load %arg20[%c0_82, %c0_83] : memref<2x16xf32, #tpu.memory_space<vmem>>, vector<2x16xf32>
    tpu.vector_store %arg20[%c0_82, %c0_83], %131 {strides = array<i32>} : memref<2x16xf32, #tpu.memory_space<vmem>>, vector<2x16xf32>,
    %133 = tpu.iota {dimensions = array<i32: 0>} : vector<2x16xi32>
    %c0_i32 = arith.constant 0 : i32
    %134 = vector.broadcast %c0_i32 : i32 to vector<2x16xi32>
    %135 = vector.extract_strided_slice %131 {offsets = [0, 0], sizes = [1, 16], strides = [1, 1]} : vector<2x16xf32> to vector<1x16xf32>
    %136 = vector.broadcast %135 : vector<1x16xf32> to vector<2x16xf32>
    %137 = arith.cmpf ogt, %136, %131 : vector<2x16xf32>
    %138 = vector.broadcast %135 : vector<1x16xf32> to vector<2x16xf32>
    %139 = arith.cmpf oeq, %138, %131 : vector<2x16xf32>
    %c0_i32_84 = arith.constant 0 : i32
    %140 = vector.broadcast %c0_i32_84 : i32 to vector<2x16xi32>
    %141 = arith.cmpi sgt, %133, %140 : vector<2x16xi32>
    %142 = arith.andi %139, %141 : vector<2x16xi1>
    %143 = arith.ori %137, %142 : vector<2x16xi1>
    %144 = arith.extui %143 : vector<2x16xi1> to vector<2x16xi32>
    %145 = arith.addi %134, %144 : vector<2x16xi32>
    %146 = vector.extract_strided_slice %131 {offsets = [1, 0], sizes = [1, 16], strides = [1, 1]} : vector<2x16xf32> to vector<1x16xf32>
    %147 = vector.broadcast %146 : vector<1x16xf32> to vector<2x16xf32>
    %148 = arith.cmpf ogt, %147, %131 : vector<2x16xf32>
    %149 = vector.broadcast %146 : vector<1x16xf32> to vector<2x16xf32>
    %150 = arith.cmpf oeq, %149, %131 : vector<2x16xf32>
    %c1_i32 = arith.constant 1 : i32
    %151 = vector.broadcast %c1_i32 : i32 to vector<2x16xi32>
    %152 = arith.cmpi sgt, %133, %151 : vector<2x16xi32>
    %153 = arith.andi %150, %152 : vector<2x16xi1>
    %154 = arith.ori %148, %153 : vector<2x16xi1>
    %155 = arith.extui %154 : vector<2x16xi1> to vector<2x16xi32>
    %156 = arith.addi %145, %155 : vector<2x16xi32>
    %c1_i32_85 = arith.constant 1 : i32
    %157 = vector.broadcast %c1_i32_85 : i32 to vector<2x16xi32>
    %158 = arith.cmpi slt, %156, %157 : vector<2x16xi32>
    %cst_86 = arith.constant 1.000000e+00 : f32
    %cst_87 = arith.constant -1.000000e+00 : f32
    %159 = vector.broadcast %cst_86 : f32 to vector<2x16xf32>
    %160 = vector.broadcast %cst_87 : f32 to vector<2x16xf32>
    %161 = arith.select %158, %159, %160 : vector<2x16xi1>, vector<2x16xf32>
    %c0_88 = arith.constant 0 : index
    %c0_89 = arith.constant 0 : index
    %162 = vector.load %arg21[%c0_88, %c0_89] : memref<2x16xf32, #tpu.memory_space<vmem>>, vector<2x16xf32>
    tpu.vector_store %arg21[%c0_88, %c0_89], %161 {strides = array<i32>} : memref<2x16xf32, #tpu.memory_space<vmem>>, vector<2x16xf32>,
    return
  }
}

</mosaic_0001>

<llo_original>
// kernel: cnn_forward.1
$region0: #{cnn_forward.1}
  #allocation0 [shape = 'u32[]', space=smem, size = 0x4, offset = 0x4, fixed_abs, tag = 'smem constant byte address 0x4 - core index']
  #allocation1 [shape = 'u32[144,128]{1,0:T(1,128)}', space=vmem, size = 0x12000, scoped, tag = 'internal scratch']
  %s0 = inlined_call_operand.vmem [shape: f32[36,48], index: 0, kind: input, shape index: {}]
  %s1 = inlined_call_operand.vmem [shape: bf16[3,48,128], index: 1, kind: input, shape index: {}]
  %s2 = inlined_call_operand.vmem [shape: f32[1,128], index: 2, kind: input, shape index: {}]
  %s3 = inlined_call_operand.vmem [shape: bf16[40,34], index: 3, kind: input, shape index: {}]
  %s4 = inlined_call_operand.vmem [shape: bf16[128,128], index: 4, kind: input, shape index: {}]
  %s5 = inlined_call_operand.vmem [shape: bf16[3,64,128], index: 5, kind: input, shape index: {}]
  %s6 = inlined_call_operand.vmem [shape: f32[1,128], index: 6, kind: input, shape index: {}]
  %s7 = inlined_call_operand.vmem [shape: bf16[24,18], index: 7, kind: input, shape index: {}]
  %s8 = inlined_call_operand.vmem [shape: bf16[128,128], index: 8, kind: input, shape index: {}]
  %s9 = inlined_call_operand.vmem [shape: bf16[3,64,128], index: 9, kind: input, shape index: {}]
  %s10 = inlined_call_operand.vmem [shape: f32[1,128], index: 10, kind: input, shape index: {}]
  %s11 = inlined_call_operand.vmem [shape: bf16[8,10], index: 11, kind: input, shape index: {}]
  %s12 = inlined_call_operand.vmem [shape: bf16[128,128], index: 12, kind: input, shape index: {}]
  %s13 = inlined_call_operand.vmem [shape: bf16[128,64], index: 13, kind: input, shape index: {}]
  %s14 = inlined_call_operand.vmem [shape: f32[1,64], index: 14, kind: input, shape index: {}]
  %s15 = inlined_call_operand.vmem [shape: bf16[64,64], index: 15, kind: input, shape index: {}]
  %s16 = inlined_call_operand.vmem [shape: f32[1,64], index: 16, kind: input, shape index: {}]
  %s17 = inlined_call_operand.vmem [shape: bf16[64,16], index: 17, kind: input, shape index: {}]
  %s18 = inlined_call_operand.vmem [shape: f32[1,16], index: 18, kind: input, shape index: {}]
  %s19 = inlined_call_operand.hbm [shape: f32[2,64], index: 19, kind: output, shape index: {0}]
  %s20 = inlined_call_operand.hbm [shape: f32[2,16], index: 20, kind: output, shape index: {1}]
  %s21 = inlined_call_operand.hbm [shape: f32[2,16], index: 21, kind: output, shape index: {2}]
  %22 = xla_tuple %s19, %s20, %s21
  %s23 = sld [smem:[#allocation0]]
  $region102: #{cnn_forward.1} parent=0
    _
  %s25 = ssub.s32 1, %s23
  %s26 = scalar_select 0, %s25, %s23
  $region1: #{cnn_forward.1} parent=0
    #allocation2 [shape = 'u8[1024]{0}', space=vmem, size = 0x400, scoped, tag = 'output window, operand 0, single buffered']
    #allocation3 [shape = 's32[1]{0}', space=sflag, size = 0x4, scoped, tag = 'scoped memory for cnn_forward.1']
    #allocation4 [shape = 'u8[1024]{0}', space=vmem, size = 0x400, scoped, tag = 'output window, operand 1, single buffered']
    #allocation5 [shape = 's32[1]{0}', space=sflag, size = 0x4, scoped, tag = 'scoped memory for cnn_forward.1']
    #allocation6 [shape = 'u8[1024]{0}', space=vmem, size = 0x400, scoped, tag = 'output window, operand 2, single buffered']
    %27 = vsyncpa [#allocation3], 0
    %28 = vsyncpa [#allocation5], 0
    // Predicated region
    $region2: #{cnn_forward.1} parent=1 // pred_check
      _
    $region3: #{cnn_forward.1} parent=1 // pred_check_branch
      %30 = sbr.rel (0) target = $region5
    $region4: #{cnn_forward.1} parent=1 // pred_region
      _
    $region5: #{cnn_forward.1} parent=1 // pred_fallthru
      _
    // Predicated region
    $region6: #{cnn_forward.1} parent=1 // pred_check
      _
    $region7: #{cnn_forward.1} parent=1 // pred_check_branch
      %32 = sbr.rel (0) target = $region9
    $region8: #{cnn_forward.1} parent=1 // pred_region
      _
    $region9: #{cnn_forward.1} parent=1 // pred_fallthru
      _
    // Predicated region
    $region10: #{cnn_forward.1} parent=1 // pred_check
      _
    $region11: #{cnn_forward.1} parent=1 // pred_check_branch
      %34 = sbr.rel (0) target = $region13
    $region12: #{cnn_forward.1} parent=1 // pred_region
      _
    $region13: #{cnn_forward.1} parent=1 // pred_fallthru
      _
    // Predicated region
    $region14: #{cnn_forward.1} parent=1 // pred_check
      _
    $region15: #{cnn_forward.1} parent=1 // pred_check_branch
      %36 = sbr.rel (0) target = $region17
    $region16: #{cnn_forward.1} parent=1 // pred_region
      _
    $region17: #{cnn_forward.1} parent=1 // pred_fallthru
      _
    // Predicated region
    $region18: #{cnn_forward.1} parent=1 // pred_check
      _
    $region19: #{cnn_forward.1} parent=1 // pred_check_branch
      %38 = sbr.rel (0) target = $region21
    $region20: #{cnn_forward.1} parent=1 // pred_region
      _
    $region21: #{cnn_forward.1} parent=1 // pred_fallthru
      _
    // Predicated region
    $region22: #{cnn_forward.1} parent=1 // pred_check
      _
    $region23: #{cnn_forward.1} parent=1 // pred_check_branch
      %40 = sbr.rel (0) target = $region25
    $region24: #{cnn_forward.1} parent=1 // pred_region
      _
    $region25: #{cnn_forward.1} parent=1 // pred_fallthru
      _
    // Predicated region
    $region26: #{cnn_forward.1} parent=1 // pred_check
      _
    $region27: #{cnn_forward.1} parent=1 // pred_check_branch
      %42 = sbr.rel (0) target = $region29
    $region28: #{cnn_forward.1} parent=1 // pred_region
      _
    $region29: #{cnn_forward.1} parent=1 // pred_fallthru
      _
    // Predicated region
    $region30: #{cnn_forward.1} parent=1 // pred_check
      _
    $region31: #{cnn_forward.1} parent=1 // pred_check_branch
      %44 = sbr.rel (0) target = $region33
    $region32: #{cnn_forward.1} parent=1 // pred_region
      _
    $region33: #{cnn_forward.1} parent=1 // pred_fallthru
      _
    // Predicated region
    $region34: #{cnn_forward.1} parent=1 // pred_check
      _
    $region35: #{cnn_forward.1} parent=1 // pred_check_branch
      %46 = sbr.rel (0) target = $region37
    $region36: #{cnn_forward.1} parent=1 // pred_region
      _
    $region37: #{cnn_forward.1} parent=1 // pred_fallthru
      _
    // Predicated region
    $region38: #{cnn_forward.1} parent=1 // pred_check
      _
    $region39: #{cnn_forward.1} parent=1 // pred_check_branch
      %48 = sbr.rel (0) target = $region41
    $region40: #{cnn_forward.1} parent=1 // pred_region
      _
    $region41: #{cnn_forward.1} parent=1 // pred_fallthru
      _
    // Predicated region
    $region42: #{cnn_forward.1} parent=1 // pred_check
      _
    $region43: #{cnn_forward.1} parent=1 // pred_check_branch
      %50 = sbr.rel (0) target = $region45
    $region44: #{cnn_forward.1} parent=1 // pred_region
      _
    $region45: #{cnn_forward.1} parent=1 // pred_fallthru
      _
    // Predicated region
    $region46: #{cnn_forward.1} parent=1 // pred_check
      _
    $region47: #{cnn_forward.1} parent=1 // pred_check_branch
      %52 = sbr.rel (0) target = $region49
    $region48: #{cnn_forward.1} parent=1 // pred_region
      _
    $region49: #{cnn_forward.1} parent=1 // pred_fallthru
      _
    // Predicated region
    $region50: #{cnn_forward.1} parent=1 // pred_check
      _
    $region51: #{cnn_forward.1} parent=1 // pred_check_branch
      %54 = sbr.rel (0) target = $region53
    $region52: #{cnn_forward.1} parent=1 // pred_region
      _
    $region53: #{cnn_forward.1} parent=1 // pred_fallthru
      _
    // Predicated region
    $region54: #{cnn_forward.1} parent=1 // pred_check
      _
    $region55: #{cnn_forward.1} parent=1 // pred_check_branch
      %56 = sbr.rel (0) target = $region57
    $region56: #{cnn_forward.1} parent=1 // pred_region
      _
    $region57: #{cnn_forward.1} parent=1 // pred_fallthru
      _
    // Predicated region
    $region58: #{cnn_forward.1} parent=1 // pred_check
      _
    $region59: #{cnn_forward.1} parent=1 // pred_check_branch
      %58 = sbr.rel (0) target = $region61
    $region60: #{cnn_forward.1} parent=1 // pred_region
      _
    $region61: #{cnn_forward.1} parent=1 // pred_fallthru
      _
    // Predicated region
    $region62: #{cnn_forward.1} parent=1 // pred_check
      _
    $region63: #{cnn_forward.1} parent=1 // pred_check_branch
      %60 = sbr.rel (0) target = $region65
    $region64: #{cnn_forward.1} parent=1 // pred_region
      _
    $region65: #{cnn_forward.1} parent=1 // pred_fallthru
      _
    // Predicated region
    $region66: #{cnn_forward.1} parent=1 // pred_check
      _
    $region67: #{cnn_forward.1} parent=1 // pred_check_branch
      %62 = sbr.rel (0) target = $region69
    $region68: #{cnn_forward.1} parent=1 // pred_region
      _
    $region69: #{cnn_forward.1} parent=1 // pred_fallthru
      _
    // Predicated region
    $region70: #{cnn_forward.1} parent=1 // pred_check
      _
    $region71: #{cnn_forward.1} parent=1 // pred_check_branch
      %64 = sbr.rel (0) target = $region73
    $region72: #{cnn_forward.1} parent=1 // pred_region
      _
    $region73: #{cnn_forward.1} parent=1 // pred_fallthru
      _
    // Predicated region
    $region74: #{cnn_forward.1} parent=1 // pred_check
      _
    $region75: #{cnn_forward.1} parent=1 // pred_check_branch
      %66 = sbr.rel (0) target = $region77
    $region76: #{cnn_forward.1} parent=1 // pred_region
      _
    $region77: #{cnn_forward.1} parent=1 // pred_fallthru
      _
    %v68 = vld [vmem:[%s0] sm:$0xff]
    %v69 = vld [vmem:[%s0 + $0x8] sm:$0xff]
    %v70 = vld [vmem:[%s0 + $0x10] sm:$0xff]
    %v71 = vld [vmem:[%s0 + $0x18] sm:$0xff]
    %v72 = vld [vmem:[%s0 + $0x20] sm:$0xf]
    %v73 = vld [vmem:[%s2] sm:$0x1]
    %v74 = vpack.c.bf16 %v69, %v68
    %v75 = vpack.c.bf16 %v71, %v70
    %v76 = vpack.c.bf16 %v72, %v72
    %v77 = vld [vmem:[%s1] sm:$0xf]
    %v78 = vld [vmem:[%s1 + $0x4] sm:$0xf]
    %v79 = vld [vmem:[%s1 + $0x8] sm:$0xf]
    %v80 = vld [vmem:[%s1 + $0xc] sm:$0xf]
    %v81 = vld [vmem:[%s1 + $0x10] sm:$0xf]
    %v82 = vld [vmem:[%s1 + $0x14] sm:$0xf]
    %v89 = vunpack.c.l.b16 %v77
    %v90 = vunpack.c.l.b16 %v78
    %v91 = vunpack.c.l.b16 %v79
    %v92 = vunpack.c.l.b16 %v80
    %v93 = vunpack.c.l.b16 %v81
    %v94 = vunpack.c.l.b16 %v82
    %v95 = vpack.c.b16 %v90, %v89
    %v96 = vpack.c.b16 %v92, %v91
    %v97 = vpack.c.b16 %v94, %v93
    %vm101 = vcmask 392192
    %v103 = vsel %vm101, %v74, 0
    %v106 = vsel %vm101, %v75, 0
    %v109 = vsel %vm101, %v76, 0
    %111 = vmatprep.subr.bf16.mxu0 0
    %112 = vmatpush1.bf16.msra.mxu0 %v95
    %113 = vmatprep.subr.bf16.mxu0 0
    %114 = vmatpush1.bf16.msra.mxu0 %v96
    %115 = vmatprep.subr.bf16.mxu0 0
    %116 = vmatpush1.bf16.msra.mxu0 %v97
    %117 = vmatprep.subr.bf16.mxu0 0
    %118 = vmatpush1.bf16.msra.mxu0 0
    %119 = vmatprep.subr.bf16.mxu0 0
    %120 = vmatpush1.bf16.msra.mxu0 0
    %121 = vmatprep.subr.bf16.mxu0 0
    %122 = vmatpush1.bf16.msra.mxu0 0
    %123 = vmatprep.subr.bf16.mxu0 0
    %124 = vmatpush1.bf16.msra.mxu0 0
    %125 = vmatprep.subr.bf16.mxu0 0
    %126 = vmatpush1.bf16.msra.mxu0 0
    %127 = vmatprep.subr.bf16.mxu0 0
    %128 = vmatpush1.bf16.msra.mxu0 0
    %129 = vmatprep.subr.bf16.mxu0 0
    %130 = vmatpush1.bf16.msra.mxu0 0
    %131 = vmatprep.subr.bf16.mxu0 0
    %132 = vmatpush1.bf16.msra.mxu0 0
    %133 = vmatprep.subr.bf16.mxu0 0
    %134 = vmatpush1.bf16.msra.mxu0 0
    %135 = vmatprep.subr.bf16.mxu0 0
    %136 = vmatpush1.bf16.msra.mxu0 0
    %137 = vmatprep.subr.bf16.mxu0 0
    %138 = vmatpush1.bf16.msra.mxu0 0
    %139 = vmatprep.subr.bf16.mxu0 0
    %140 = vmatpush1.bf16.msra.mxu0 0
    %141 = vmatprep.subr.bf16.mxu0 0
    %142 = vmatpush1.bf16.msra.mxu0 0
    %143 = vmatprep.mubr.bf16.mxu0 0
    %144 = vmatmul.mubr.bf16.gmra.mrb[0].mxu0 %v103
    %v145 = vpop.f32.mrb[0].mxu0
    %v146 = vadd.f32 0.0, %v145
    %v147 = vpop.f32.mrb[0].mxu0
    %v148 = vpop.f32.mrb[0].mxu0
    %v149 = vadd.f32 0.0, %v148
    %v150 = vpop.f32.mrb[0].mxu0
    %151 = vmatprep.mubr.bf16.mxu0 0
    %152 = vmatmul.mubr.bf16.gmra.mrb[0].mxu0 %v106
    %v153 = vpop.f32.mrb[0].mxu0
    %v154 = vadd.f32 0.0, %v153
    %v155 = vpop.f32.mrb[0].mxu0
    %v156 = vpop.f32.mrb[0].mxu0
    %v157 = vadd.f32 0.0, %v156
    %v158 = vpop.f32.mrb[0].mxu0
    %159 = vmatprep.mubr.bf16.mxu0 0
    %160 = vmatmul.mubr.bf16.gmra.mrb[0].mxu0 %v109
    %v161 = vpop.f32.mrb[0].mxu0
    %v162 = vadd.f32 0.0, %v161
    %v163 = vpop.f32.mrb[0].mxu0
    %v164 = vpop.f32.mrb[0].mxu0
    %v165 = vpop.f32.mrb[0].mxu0
    %166 = vdwg.mxu0
    %v168 = vlaneseq
    %v169 = vshrl.u32 %v168, 7
    %v170 = vsub.s32 0, %v169
    %v171 = vrot.slane %v73, %v170
    %v173 = vadd.f32 %v171, %v146
    %v174 = vadd.f32 %v171, %v149
    %v175 = vadd.f32 %v171, %v154
    %v176 = vadd.f32 %v171, %v157
    %v177 = vadd.f32 %v171, %v162
    %s178 = scalar_lea.vmem %s1, 24
    %v179 = vld [vmem:[%s178] sm:$0xf]
    %v180 = vld [vmem:[%s178 + $0x4] sm:$0xf]
    %v181 = vld [vmem:[%s178 + $0x8] sm:$0xf]
    %v182 = vld [vmem:[%s178 + $0xc] sm:$0xf]
    %v183 = vld [vmem:[%s178 + $0x10] sm:$0xf]
    %v184 = vld [vmem:[%s178 + $0x14] sm:$0xf]
    %vm185 = vsmask.f32 7424
    %v186 = vshrl.u32 %v74, 16
    %v188 = vshll.u32 %v74, 16
    %v190 = vrot.slane %v188, 1
    %v191 = vor.u32 %v186, %v190
    %v192 = vshll.u32 %v75, 16
    %v194 = vrot.slane %v192, 1
    %v195 = vsel %vm185, %v191, %v194
    %v196 = vshrl.u32 %v75, 16
    %v198 = vor.u32 %v196, %v194
    %v199 = vshll.u32 %v76, 16
    %v201 = vrot.slane %v199, 1
    %v202 = vsel %vm185, %v198, %v201
    %v203 = vshrl.u32 %v76, 16
    %v205 = vor.u32 %v203, %v201
    %v212 = vunpack.c.l.b16 %v179
    %v213 = vunpack.c.l.b16 %v180
    %v214 = vunpack.c.l.b16 %v181
    %v215 = vunpack.c.l.b16 %v182
    %v216 = vunpack.c.l.b16 %v183
    %v217 = vunpack.c.l.b16 %v184
    %v218 = vpack.c.b16 %v213, %v212
    %v219 = vpack.c.b16 %v215, %v214
    %v220 = vpack.c.b16 %v217, %v216
    %v225 = vsel %vm101, %v195, 0
    %v228 = vsel %vm101, %v202, 0
    %v231 = vsel %vm101, %v205, 0
    %233 = vmatprep.subr.bf16.mxu0 0
    %234 = vmatpush1.bf16.msra.mxu0 %v218
    %235 = vmatprep.subr.bf16.mxu0 0
    %236 = vmatpush1.bf16.msra.mxu0 %v219
    %237 = vmatprep.subr.bf16.mxu0 0
    %238 = vmatpush1.bf16.msra.mxu0 %v220
    %239 = vmatprep.subr.bf16.mxu0 0
    %240 = vmatpush1.bf16.msra.mxu0 0
    %241 = vmatprep.subr.bf16.mxu0 0
    %242 = vmatpush1.bf16.msra.mxu0 0
    %243 = vmatprep.subr.bf16.mxu0 0
    %244 = vmatpush1.bf16.msra.mxu0 0
    %245 = vmatprep.subr.bf16.mxu0 0
    %246 = vmatpush1.bf16.msra.mxu0 0
    %247 = vmatprep.subr.bf16.mxu0 0
    %248 = vmatpush1.bf16.msra.mxu0 0
    %249 = vmatprep.subr.bf16.mxu0 0
    %250 = vmatpush1.bf16.msra.mxu0 0
    %251 = vmatprep.subr.bf16.mxu0 0
    %252 = vmatpush1.bf16.msra.mxu0 0
    %253 = vmatprep.subr.bf16.mxu0 0
    %254 = vmatpush1.bf16.msra.mxu0 0
    %255 = vmatprep.subr.bf16.mxu0 0
    %256 = vmatpush1.bf16.msra.mxu0 0
    %257 = vmatprep.subr.bf16.mxu0 0
    %258 = vmatpush1.bf16.msra.mxu0 0
    %259 = vmatprep.subr.bf16.mxu0 0
    %260 = vmatpush1.bf16.msra.mxu0 0
    %261 = vmatprep.subr.bf16.mxu0 0
    %262 = vmatpush1.bf16.msra.mxu0 0
    %263 = vmatprep.subr.bf16.mxu0 0
    %264 = vmatpush1.bf16.msra.mxu0 0
    %265 = vmatprep.mubr.bf16.mxu0 0
    %266 = vmatmul.mubr.bf16.gmra.mrb[0].mxu0 %v225
    %v267 = vpop.f32.mrb[0].mxu0
    %v268 = vadd.f32 0.0, %v267
    %v269 = vpop.f32.mrb[0].mxu0
    %v270 = vpop.f32.mrb[0].mxu0
    %v271 = vadd.f32 0.0, %v270
    %v272 = vpop.f32.mrb[0].mxu0
    %273 = vmatprep.mubr.bf16.mxu0 0
    %274 = vmatmul.mubr.bf16.gmra.mrb[0].mxu0 %v228
    %v275 = vpop.f32.mrb[0].mxu0
    %v276 = vadd.f32 0.0, %v275
    %v277 = vpop.f32.mrb[0].mxu0
    %v278 = vpop.f32.mrb[0].mxu0
    %v279 = vadd.f32 0.0, %v278
    %v280 = vpop.f32.mrb[0].mxu0
    %281 = vmatprep.mubr.bf16.mxu0 0
    %282 = vmatmul.mubr.bf16.gmra.mrb[0].mxu0 %v231
    %v283 = vpop.f32.mrb[0].mxu0
    %v284 = vadd.f32 0.0, %v283
    %v285 = vpop.f32.mrb[0].mxu0
    %v286 = vpop.f32.mrb[0].mxu0
    %v287 = vpop.f32.mrb[0].mxu0
    %288 = vdwg.mxu0
    %v289 = vadd.f32 %v173, %v268
    %v290 = vadd.f32 %v174, %v271
    %v291 = vadd.f32 %v175, %v276
    %v292 = vadd.f32 %v176, %v279
    %v293 = vadd.f32 %v177, %v284
    %s294 = scalar_lea.vmem %s1, 48
    %v295 = vld [vmem:[%s294] sm:$0xf]
    %v296 = vld [vmem:[%s294 + $0x4] sm:$0xf]
    %v297 = vld [vmem:[%s294 + $0x8] sm:$0xf]
    %v298 = vld [vmem:[%s294 + $0xc] sm:$0xf]
    %v299 = vld [vmem:[%s294 + $0x10] sm:$0xf]
    %v300 = vld [vmem:[%s294 + $0x14] sm:$0xf]
    %vm304 = vcmask 1046528
    %v305 = vrot.slane %v74, 1
    %v306 = vrot.slane %v75, 1
    %v307 = vsel %vm304, %v305, %v306
    %v308 = vrot.slane %v76, 1
    %v309 = vsel %vm304, %v306, %v308
    %v316 = vunpack.c.l.b16 %v295
    %v317 = vunpack.c.l.b16 %v296
    %v318 = vunpack.c.l.b16 %v297
    %v319 = vunpack.c.l.b16 %v298
    %v320 = vunpack.c.l.b16 %v299
    %v321 = vunpack.c.l.b16 %v300
    %v322 = vpack.c.b16 %v317, %v316
    %v323 = vpack.c.b16 %v319, %v318
    %v324 = vpack.c.b16 %v321, %v320
    %v329 = vsel %vm101, %v307, 0
    %v332 = vsel %vm101, %v309, 0
    %v335 = vsel %vm101, %v308, 0
    %337 = vmatprep.subr.bf16.mxu0 0
    %338 = vmatpush1.bf16.msra.mxu0 %v322
    %339 = vmatprep.subr.bf16.mxu0 0
    %340 = vmatpush1.bf16.msra.mxu0 %v323
    %341 = vmatprep.subr.bf16.mxu0 0
    %342 = vmatpush1.bf16.msra.mxu0 %v324
    %343 = vmatprep.subr.bf16.mxu0 0
    %344 = vmatpush1.bf16.msra.mxu0 0
    %345 = vmatprep.subr.bf16.mxu0 0
    %346 = vmatpush1.bf16.msra.mxu0 0
    %347 = vmatprep.subr.bf16.mxu0 0
    %348 = vmatpush1.bf16.msra.mxu0 0
    %349 = vmatprep.subr.bf16.mxu0 0
    %350 = vmatpush1.bf16.msra.mxu0 0
    %351 = vmatprep.subr.bf16.mxu0 0
    %352 = vmatpush1.bf16.msra.mxu0 0
    %353 = vmatprep.subr.bf16.mxu0 0
    %354 = vmatpush1.bf16.msra.mxu0 0
    %355 = vmatprep.subr.bf16.mxu0 0
    %356 = vmatpush1.bf16.msra.mxu0 0
    %357 = vmatprep.subr.bf16.mxu0 0
    %358 = vmatpush1.bf16.msra.mxu0 0
    %359 = vmatprep.subr.bf16.mxu0 0
    %360 = vmatpush1.bf16.msra.mxu0 0
    %361 = vmatprep.subr.bf16.mxu0 0
    %362 = vmatpush1.bf16.msra.mxu0 0
    %363 = vmatprep.subr.bf16.mxu0 0
    %364 = vmatpush1.bf16.msra.mxu0 0
    %365 = vmatprep.subr.bf16.mxu0 0
    %366 = vmatpush1.bf16.msra.mxu0 0
    %367 = vmatprep.subr.bf16.mxu0 0
    %368 = vmatpush1.bf16.msra.mxu0 0
    %369 = vmatprep.mubr.bf16.mxu0 0
    %370 = vmatmul.mubr.bf16.gmra.mrb[0].mxu0 %v329
    %v371 = vpop.f32.mrb[0].mxu0
    %v372 = vadd.f32 0.0, %v371
    %v373 = vpop.f32.mrb[0].mxu0
    %v374 = vpop.f32.mrb[0].mxu0
    %v375 = vadd.f32 0.0, %v374
    %v376 = vpop.f32.mrb[0].mxu0
    %377 = vmatprep.mubr.bf16.mxu0 0
    %378 = vmatmul.mubr.bf16.gmra.mrb[0].mxu0 %v332
    %v379 = vpop.f32.mrb[0].mxu0
    %v380 = vadd.f32 0.0, %v379
    %v381 = vpop.f32.mrb[0].mxu0
    %v382 = vpop.f32.mrb[0].mxu0
    %v383 = vadd.f32 0.0, %v382
    %v384 = vpop.f32.mrb[0].mxu0
    %385 = vmatprep.mubr.bf16.mxu0 0
    %386 = vmatmul.mubr.bf16.gmra.mrb[0].mxu0 %v335
    %v387 = vpop.f32.mrb[0].mxu0
    %v388 = vadd.f32 0.0, %v387
    %v389 = vpop.f32.mrb[0].mxu0
    %v390 = vpop.f32.mrb[0].mxu0
    %v391 = vpop.f32.mrb[0].mxu0
    %392 = vdwg.mxu0
    %v393 = vadd.f32 %v289, %v372
    %v394 = vadd.f32 %v290, %v375
    %v395 = vadd.f32 %v291, %v380
    %v396 = vadd.f32 %v292, %v383
    %v397 = vadd.f32 %v293, %v388
    %v398 = vmax.f32 %v393, 0.0
    %v399 = vmax.f32 %v394, 0.0
    %v400 = vmax.f32 %v395, 0.0
    %v401 = vmax.f32 %v396, 0.0
    %v402 = vmax.f32 %v397, 0.0
    %v403 = vpack.c.bf16 %v399, %v398
    %v404 = vpack.c.bf16 %v401, %v400
    %v405 = vpack.c.bf16 %v402, %v402
    %v406 = vld [vmem:[%s3] sm:$0xf]
    %v407 = vld [vmem:[%s3 + $0x4] sm:$0xf]
    %v408 = vld [vmem:[%s3 + $0x8] sm:$0xf]
    %v409 = vld [vmem:[%s3 + $0xc] sm:$0xf]
    %v410 = vld [vmem:[%s3 + $0x10] sm:$0xf]
    %v416 = vunpack.c.l.b16 %v406
    %v417 = vunpack.c.l.b16 %v407
    %v418 = vunpack.c.l.b16 %v408
    %v419 = vunpack.c.l.b16 %v409
    %v420 = vunpack.c.l.b16 %v410
    %v421 = vpack.c.b16 %v417, %v416
    %v422 = vpack.c.b16 %v419, %v418
    %v423 = vpack.c.b16 %v420, %v420
    %vm424 = vcmask 277504
    %v426 = vsel %vm424, %v421, 0
    %v429 = vsel %vm424, %v422, 0
    %v432 = vsel %vm424, %v423, 0
    %vm434 = vcmask 1040384
    %v436 = vsel %vm434, %v405, 0
    %438 = vmatprep.subr.bf16.mxu0 0
    %439 = vmatpush1.bf16.msra.mxu0 %v403
    %440 = vmatprep.subr.bf16.mxu0 0
    %441 = vmatpush1.bf16.msra.mxu0 %v404
    %442 = vmatprep.subr.bf16.mxu0 0
    %443 = vmatpush1.bf16.msra.mxu0 %v436
    %444 = vmatprep.subr.bf16.mxu0 0
    %445 = vmatpush1.bf16.msra.mxu0 0
    %446 = vmatprep.subr.bf16.mxu0 0
    %447 = vmatpush1.bf16.msra.mxu0 0
    %448 = vmatprep.subr.bf16.mxu0 0
    %449 = vmatpush1.bf16.msra.mxu0 0
    %450 = vmatprep.subr.bf16.mxu0 0
    %451 = vmatpush1.bf16.msra.mxu0 0
    %452 = vmatprep.subr.bf16.mxu0 0
    %453 = vmatpush1.bf16.msra.mxu0 0
    %454 = vmatprep.subr.bf16.mxu0 0
    %455 = vmatpush1.bf16.msra.mxu0 0
    %456 = vmatprep.subr.bf16.mxu0 0
    %457 = vmatpush1.bf16.msra.mxu0 0
    %458 = vmatprep.subr.bf16.mxu0 0
    %459 = vmatpush1.bf16.msra.mxu0 0
    %460 = vmatprep.subr.bf16.mxu0 0
    %461 = vmatpush1.bf16.msra.mxu0 0
    %462 = vmatprep.subr.bf16.mxu0 0
    %463 = vmatpush1.bf16.msra.mxu0 0
    %464 = vmatprep.subr.bf16.mxu0 0
    %465 = vmatpush1.bf16.msra.mxu0 0
    %466 = vmatprep.subr.bf16.mxu0 0
    %467 = vmatpush1.bf16.msra.mxu0 0
    %468 = vmatprep.subr.bf16.mxu0 0
    %469 = vmatpush1.bf16.msra.mxu0 0
    %470 = vmatprep.mubr.bf16.mxu0 0
    %471 = vmatmul.mubr.bf16.gmra.mrb[0].mxu0 %v426
    %v472 = vpop.f32.mrb[0].mxu0
    %v473 = vadd.f32 0.0, %v472
    %v474 = vpop.f32.mrb[0].mxu0
    %v475 = vpop.f32.mrb[0].mxu0
    %v476 = vadd.f32 0.0, %v475
    %v477 = vpop.f32.mrb[0].mxu0
    %478 = vmatprep.mubr.bf16.mxu0 0
    %479 = vmatmul.mubr.bf16.gmra.mrb[0].mxu0 %v429
    %v480 = vpop.f32.mrb[0].mxu0
    %v481 = vadd.f32 0.0, %v480
    %v482 = vpop.f32.mrb[0].mxu0
    %v483 = vpop.f32.mrb[0].mxu0
    %v484 = vadd.f32 0.0, %v483
    %v485 = vpop.f32.mrb[0].mxu0
    %486 = vmatprep.mubr.bf16.mxu0 0
    %487 = vmatmul.mubr.bf16.gmra.mrb[0].mxu0 %v432
    %v488 = vpop.f32.mrb[0].mxu0
    %v489 = vadd.f32 0.0, %v488
    %v490 = vpop.f32.mrb[0].mxu0
    %v491 = vpop.f32.mrb[0].mxu0
    %v492 = vpop.f32.mrb[0].mxu0
    %493 = vdwg.mxu0
    %vm497 = vcmask 1043456
    %v498 = vrot.slane %v481, 4
    %v499 = vrot.slane %v484, 4
    %v500 = vsel %vm497, %v498, %v499
    %v501 = vrot.slane %v489, 4
    %v502 = vsel %vm497, %v499, %v501
    %v506 = vmax.f32 %v473, %v500
    %v507 = vmax.f32 %v476, %v502
    %v508 = vmax.f32 %v481, %v501
    %v509 = vpack.c.bf16 %v507, %v506
    %v510 = vpack.c.bf16 %v508, %v508
    %v511 = vld [vmem:[%s4] sm:$0xf]
    %v512 = vld [vmem:[%s4 + $0x4] sm:$0xf]
    %v513 = vld [vmem:[%s4 + $0x8] sm:$0xf]
    %v514 = vld [vmem:[%s4 + $0xc] sm:$0xf]
    %v515 = vld [vmem:[%s4 + $0x10] sm:$0xf]
    %v516 = vld [vmem:[%s4 + $0x14] sm:$0xf]
    %v517 = vld [vmem:[%s4 + $0x18] sm:$0xf]
    %v518 = vld [vmem:[%s4 + $0x1c] sm:$0xf]
    %v519 = vld [vmem:[%s4 + $0x20] sm:$0xf]
    %v520 = vld [vmem:[%s4 + $0x24] sm:$0xf]
    %v521 = vld [vmem:[%s4 + $0x28] sm:$0xf]
    %v522 = vld [vmem:[%s4 + $0x2c] sm:$0xf]
    %v523 = vld [vmem:[%s4 + $0x30] sm:$0xf]
    %v524 = vld [vmem:[%s4 + $0x34] sm:$0xf]
    %v525 = vld [vmem:[%s4 + $0x38] sm:$0xf]
    %v526 = vld [vmem:[%s4 + $0x3c] sm:$0xf]
    %v543 = vunpack.c.l.b16 %v511
    %v544 = vunpack.c.l.b16 %v512
    %v545 = vunpack.c.l.b16 %v513
    %v546 = vunpack.c.l.b16 %v514
    %v547 = vunpack.c.l.b16 %v515
    %v548 = vunpack.c.l.b16 %v516
    %v549 = vunpack.c.l.b16 %v517
    %v550 = vunpack.c.l.b16 %v518
    %v551 = vunpack.c.l.b16 %v519
    %v552 = vunpack.c.l.b16 %v520
    %v553 = vunpack.c.l.b16 %v521
    %v554 = vunpack.c.l.b16 %v522
    %v555 = vunpack.c.l.b16 %v523
    %v556 = vunpack.c.l.b16 %v524
    %v557 = vunpack.c.l.b16 %v525
    %v558 = vunpack.c.l.b16 %v526
    %v559 = vpack.c.b16 %v544, %v543
    %v560 = vpack.c.b16 %v546, %v545
    %v561 = vpack.c.b16 %v548, %v547
    %v562 = vpack.c.b16 %v550, %v549
    %v563 = vpack.c.b16 %v552, %v551
    %v564 = vpack.c.b16 %v554, %v553
    %v565 = vpack.c.b16 %v556, %v555
    %v566 = vpack.c.b16 %v558, %v557
    %575 = vmatprep.subr.bf16.mxu0 0
    %576 = vmatpush1.bf16.msra.mxu0 %v559
    %577 = vmatprep.subr.bf16.mxu0 0
    %578 = vmatpush1.bf16.msra.mxu0 %v560
    %579 = vmatprep.subr.bf16.mxu0 0
    %580 = vmatpush1.bf16.msra.mxu0 %v561
    %581 = vmatprep.subr.bf16.mxu0 0
    %582 = vmatpush1.bf16.msra.mxu0 %v562
    %583 = vmatprep.subr.bf16.mxu0 0
    %584 = vmatpush1.bf16.msra.mxu0 %v563
    %585 = vmatprep.subr.bf16.mxu0 0
    %586 = vmatpush1.bf16.msra.mxu0 %v564
    %587 = vmatprep.subr.bf16.mxu0 0
    %588 = vmatpush1.bf16.msra.mxu0 %v565
    %589 = vmatprep.subr.bf16.mxu0 0
    %590 = vmatpush1.bf16.msra.mxu0 %v566
    %591 = vmatprep.subr.bf16.mxu0 0
    %592 = vmatpush1.bf16.msra.mxu0 0
    %593 = vmatprep.subr.bf16.mxu0 0
    %594 = vmatpush1.bf16.msra.mxu0 0
    %595 = vmatprep.subr.bf16.mxu0 0
    %596 = vmatpush1.bf16.msra.mxu0 0
    %597 = vmatprep.subr.bf16.mxu0 0
    %598 = vmatpush1.bf16.msra.mxu0 0
    %599 = vmatprep.subr.bf16.mxu0 0
    %600 = vmatpush1.bf16.msra.mxu0 0
    %601 = vmatprep.subr.bf16.mxu0 0
    %602 = vmatpush1.bf16.msra.mxu0 0
    %603 = vmatprep.subr.bf16.mxu0 0
    %604 = vmatpush1.bf16.msra.mxu0 0
    %605 = vmatprep.subr.bf16.mxu0 0
    %606 = vmatpush1.bf16.msra.mxu0 0
    %607 = vmatprep.mubr.bf16.mxu0 0
    %608 = vmatmul.mubr.bf16.gmra.mrb[0].mxu0 %v509
    %v609 = vpop.f32.mrb[0].mxu0
    %v610 = vadd.f32 0.0, %v609
    %v611 = vpop.f32.mrb[0].mxu0
    %v612 = vpop.f32.mrb[0].mxu0
    %v613 = vadd.f32 0.0, %v612
    %v614 = vpop.f32.mrb[0].mxu0
    %615 = vmatprep.mubr.bf16.mxu0 0
    %616 = vmatmul.mubr.bf16.gmra.mrb[0].mxu0 %v510
    %v617 = vpop.f32.mrb[0].mxu0
    %v618 = vadd.f32 0.0, %v617
    %v619 = vpop.f32.mrb[0].mxu0
    %v620 = vpop.f32.mrb[0].mxu0
    %v621 = vpop.f32.mrb[0].mxu0
    %622 = vdwg.mxu0
    %626 = vrot.lane.b32.xlu0 %v610, 64
    %v627 = vpop.permute.xlu0 %626
    %628 = vrot.lane.b32.xlu0 %v613, 64
    %v629 = vpop.permute.xlu0 %628
    %630 = vrot.lane.b32.xlu0 %v618, 64
    %v631 = vpop.permute.xlu0 %630
    %v635 = vmax.f32 %v610, %v627
    %v636 = vmax.f32 %v613, %v629
    %v637 = vmax.f32 %v618, %v631
    %v638 = vld [vmem:[%s6] sm:$0x1]
    %v639 = vpack.c.bf16 %v636, %v635
    %v640 = vpack.c.bf16 %v637, %v637
    %v641 = vld [vmem:[%s5] sm:$0xf]
    %v642 = vld [vmem:[%s5 + $0x4] sm:$0xf]
    %v643 = vld [vmem:[%s5 + $0x8] sm:$0xf]
    %v644 = vld [vmem:[%s5 + $0xc] sm:$0xf]
    %v645 = vld [vmem:[%s5 + $0x10] sm:$0xf]
    %v646 = vld [vmem:[%s5 + $0x14] sm:$0xf]
    %v647 = vld [vmem:[%s5 + $0x18] sm:$0xf]
    %v648 = vld [vmem:[%s5 + $0x1c] sm:$0xf]
    %v657 = vunpack.c.l.b16 %v641
    %v658 = vunpack.c.l.b16 %v642
    %v659 = vunpack.c.l.b16 %v643
    %v660 = vunpack.c.l.b16 %v644
    %v661 = vunpack.c.l.b16 %v645
    %v662 = vunpack.c.l.b16 %v646
    %v663 = vunpack.c.l.b16 %v647
    %v664 = vunpack.c.l.b16 %v648
    %v665 = vpack.c.b16 %v658, %v657
    %v666 = vpack.c.b16 %v660, %v659
    %v667 = vpack.c.b16 %v662, %v661
    %v668 = vpack.c.b16 %v664, %v663
    %vm673 = vcmask 523264
    %v675 = vsel %vm673, %v639, 0
    %v678 = vsel %vm673, %v640, 0
    %680 = vmatprep.subr.bf16.mxu0 0
    %681 = vmatpush1.bf16.msra.mxu0 %v665
    %682 = vmatprep.subr.bf16.mxu0 0
    %683 = vmatpush1.bf16.msra.mxu0 %v666
    %684 = vmatprep.subr.bf16.mxu0 0
    %685 = vmatpush1.bf16.msra.mxu0 %v667
    %686 = vmatprep.subr.bf16.mxu0 0
    %687 = vmatpush1.bf16.msra.mxu0 %v668
    %688 = vmatprep.subr.bf16.mxu0 0
    %689 = vmatpush1.bf16.msra.mxu0 0
    %690 = vmatprep.subr.bf16.mxu0 0
    %691 = vmatpush1.bf16.msra.mxu0 0
    %692 = vmatprep.subr.bf16.mxu0 0
    %693 = vmatpush1.bf16.msra.mxu0 0
    %694 = vmatprep.subr.bf16.mxu0 0
    %695 = vmatpush1.bf16.msra.mxu0 0
    %696 = vmatprep.subr.bf16.mxu0 0
    %697 = vmatpush1.bf16.msra.mxu0 0
    %698 = vmatprep.subr.bf16.mxu0 0
    %699 = vmatpush1.bf16.msra.mxu0 0
    %700 = vmatprep.subr.bf16.mxu0 0
    %701 = vmatpush1.bf16.msra.mxu0 0
    %702 = vmatprep.subr.bf16.mxu0 0
    %703 = vmatpush1.bf16.msra.mxu0 0
    %704 = vmatprep.subr.bf16.mxu0 0
    %705 = vmatpush1.bf16.msra.mxu0 0
    %706 = vmatprep.subr.bf16.mxu0 0
    %707 = vmatpush1.bf16.msra.mxu0 0
    %708 = vmatprep.subr.bf16.mxu0 0
    %709 = vmatpush1.bf16.msra.mxu0 0
    %710 = vmatprep.subr.bf16.mxu0 0
    %711 = vmatpush1.bf16.msra.mxu0 0
    %712 = vmatprep.mubr.bf16.mxu0 0
    %713 = vmatmul.mubr.bf16.gmra.mrb[0].mxu0 %v675
    %v714 = vpop.f32.mrb[0].mxu0
    %v715 = vadd.f32 0.0, %v714
    %v716 = vpop.f32.mrb[0].mxu0
    %v717 = vpop.f32.mrb[0].mxu0
    %v718 = vadd.f32 0.0, %v717
    %v719 = vpop.f32.mrb[0].mxu0
    %720 = vmatprep.mubr.bf16.mxu0 0
    %721 = vmatmul.mubr.bf16.gmra.mrb[0].mxu0 %v678
    %v722 = vpop.f32.mrb[0].mxu0
    %v723 = vadd.f32 0.0, %v722
    %v724 = vpop.f32.mrb[0].mxu0
    %v725 = vpop.f32.mrb[0].mxu0
    %v726 = vpop.f32.mrb[0].mxu0
    %727 = vdwg.mxu0
    %v729 = vlaneseq
    %v730 = vshrl.u32 %v729, 7
    %v731 = vsub.s32 0, %v730
    %v732 = vrot.slane %v638, %v731
    %v734 = vadd.f32 %v732, %v715
    %v735 = vadd.f32 %v732, %v718
    %v736 = vadd.f32 %v732, %v723
    %s737 = scalar_lea.vmem %s5, 32
    %v738 = vld [vmem:[%s737] sm:$0xf]
    %v739 = vld [vmem:[%s737 + $0x4] sm:$0xf]
    %v740 = vld [vmem:[%s737 + $0x8] sm:$0xf]
    %v741 = vld [vmem:[%s737 + $0xc] sm:$0xf]
    %v742 = vld [vmem:[%s737 + $0x10] sm:$0xf]
    %v743 = vld [vmem:[%s737 + $0x14] sm:$0xf]
    %v744 = vld [vmem:[%s737 + $0x18] sm:$0xf]
    %v745 = vld [vmem:[%s737 + $0x1c] sm:$0xf]
    %v746 = vshrl.u32 %v639, 16
    %v748 = vshll.u32 %v639, 16
    %v750 = vrot.slane %v748, 1
    %v751 = vor.u32 %v746, %v750
    %v752 = vshll.u32 %v640, 16
    %v754 = vrot.slane %v752, 1
    %v755 = vsel %vm185, %v751, %v754
    %v756 = vshrl.u32 %v640, 16
    %v758 = vor.u32 %v756, %v754
    %v767 = vunpack.c.l.b16 %v738
    %v768 = vunpack.c.l.b16 %v739
    %v769 = vunpack.c.l.b16 %v740
    %v770 = vunpack.c.l.b16 %v741
    %v771 = vunpack.c.l.b16 %v742
    %v772 = vunpack.c.l.b16 %v743
    %v773 = vunpack.c.l.b16 %v744
    %v774 = vunpack.c.l.b16 %v745
    %v775 = vpack.c.b16 %v768, %v767
    %v776 = vpack.c.b16 %v770, %v769
    %v777 = vpack.c.b16 %v772, %v771
    %v778 = vpack.c.b16 %v774, %v773
    %v784 = vsel %vm673, %v755, 0
    %v787 = vsel %vm673, %v758, 0
    %789 = vmatprep.subr.bf16.mxu0 0
    %790 = vmatpush1.bf16.msra.mxu0 %v775
    %791 = vmatprep.subr.bf16.mxu0 0
    %792 = vmatpush1.bf16.msra.mxu0 %v776
    %793 = vmatprep.subr.bf16.mxu0 0
    %794 = vmatpush1.bf16.msra.mxu0 %v777
    %795 = vmatprep.subr.bf16.mxu0 0
    %796 = vmatpush1.bf16.msra.mxu0 %v778
    %797 = vmatprep.subr.bf16.mxu0 0
    %798 = vmatpush1.bf16.msra.mxu0 0
    %799 = vmatprep.subr.bf16.mxu0 0
    %800 = vmatpush1.bf16.msra.mxu0 0
    %801 = vmatprep.subr.bf16.mxu0 0
    %802 = vmatpush1.bf16.msra.mxu0 0
    %803 = vmatprep.subr.bf16.mxu0 0
    %804 = vmatpush1.bf16.msra.mxu0 0
    %805 = vmatprep.subr.bf16.mxu0 0
    %806 = vmatpush1.bf16.msra.mxu0 0
    %807 = vmatprep.subr.bf16.mxu0 0
    %808 = vmatpush1.bf16.msra.mxu0 0
    %809 = vmatprep.subr.bf16.mxu0 0
    %810 = vmatpush1.bf16.msra.mxu0 0
    %811 = vmatprep.subr.bf16.mxu0 0
    %812 = vmatpush1.bf16.msra.mxu0 0
    %813 = vmatprep.subr.bf16.mxu0 0
    %814 = vmatpush1.bf16.msra.mxu0 0
    %815 = vmatprep.subr.bf16.mxu0 0
    %816 = vmatpush1.bf16.msra.mxu0 0
    %817 = vmatprep.subr.bf16.mxu0 0
    %818 = vmatpush1.bf16.msra.mxu0 0
    %819 = vmatprep.subr.bf16.mxu0 0
    %820 = vmatpush1.bf16.msra.mxu0 0
    %821 = vmatprep.mubr.bf16.mxu0 0
    %822 = vmatmul.mubr.bf16.gmra.mrb[0].mxu0 %v784
    %v823 = vpop.f32.mrb[0].mxu0
    %v824 = vadd.f32 0.0, %v823
    %v825 = vpop.f32.mrb[0].mxu0
    %v826 = vpop.f32.mrb[0].mxu0
    %v827 = vadd.f32 0.0, %v826
    %v828 = vpop.f32.mrb[0].mxu0
    %829 = vmatprep.mubr.bf16.mxu0 0
    %830 = vmatmul.mubr.bf16.gmra.mrb[0].mxu0 %v787
    %v831 = vpop.f32.mrb[0].mxu0
    %v832 = vadd.f32 0.0, %v831
    %v833 = vpop.f32.mrb[0].mxu0
    %v834 = vpop.f32.mrb[0].mxu0
    %v835 = vpop.f32.mrb[0].mxu0
    %836 = vdwg.mxu0
    %v837 = vadd.f32 %v734, %v824
    %v838 = vadd.f32 %v735, %v827
    %v839 = vadd.f32 %v736, %v832
    %s840 = scalar_lea.vmem %s5, 64
    %v841 = vld [vmem:[%s840] sm:$0xf]
    %v842 = vld [vmem:[%s840 + $0x4] sm:$0xf]
    %v843 = vld [vmem:[%s840 + $0x8] sm:$0xf]
    %v844 = vld [vmem:[%s840 + $0xc] sm:$0xf]
    %v845 = vld [vmem:[%s840 + $0x10] sm:$0xf]
    %v846 = vld [vmem:[%s840 + $0x14] sm:$0xf]
    %v847 = vld [vmem:[%s840 + $0x18] sm:$0xf]
    %v848 = vld [vmem:[%s840 + $0x1c] sm:$0xf]
    %v851 = vrot.slane %v639, 1
    %v852 = vrot.slane %v640, 1
    %v853 = vsel %vm304, %v851, %v852
    %v862 = vunpack.c.l.b16 %v841
    %v863 = vunpack.c.l.b16 %v842
    %v864 = vunpack.c.l.b16 %v843
    %v865 = vunpack.c.l.b16 %v844
    %v866 = vunpack.c.l.b16 %v845
    %v867 = vunpack.c.l.b16 %v846
    %v868 = vunpack.c.l.b16 %v847
    %v869 = vunpack.c.l.b16 %v848
    %v870 = vpack.c.b16 %v863, %v862
    %v871 = vpack.c.b16 %v865, %v864
    %v872 = vpack.c.b16 %v867, %v866
    %v873 = vpack.c.b16 %v869, %v868
    %v879 = vsel %vm673, %v853, 0
    %v882 = vsel %vm673, %v852, 0
    %884 = vmatprep.subr.bf16.mxu0 0
    %885 = vmatpush1.bf16.msra.mxu0 %v870
    %886 = vmatprep.subr.bf16.mxu0 0
    %887 = vmatpush1.bf16.msra.mxu0 %v871
    %888 = vmatprep.subr.bf16.mxu0 0
    %889 = vmatpush1.bf16.msra.mxu0 %v872
    %890 = vmatprep.subr.bf16.mxu0 0
    %891 = vmatpush1.bf16.msra.mxu0 %v873
    %892 = vmatprep.subr.bf16.mxu0 0
    %893 = vmatpush1.bf16.msra.mxu0 0
    %894 = vmatprep.subr.bf16.mxu0 0
    %895 = vmatpush1.bf16.msra.mxu0 0
    %896 = vmatprep.subr.bf16.mxu0 0
    %897 = vmatpush1.bf16.msra.mxu0 0
    %898 = vmatprep.subr.bf16.mxu0 0
    %899 = vmatpush1.bf16.msra.mxu0 0
    %900 = vmatprep.subr.bf16.mxu0 0
    %901 = vmatpush1.bf16.msra.mxu0 0
    %902 = vmatprep.subr.bf16.mxu0 0
    %903 = vmatpush1.bf16.msra.mxu0 0
    %904 = vmatprep.subr.bf16.mxu0 0
    %905 = vmatpush1.bf16.msra.mxu0 0
    %906 = vmatprep.subr.bf16.mxu0 0
    %907 = vmatpush1.bf16.msra.mxu0 0
    %908 = vmatprep.subr.bf16.mxu0 0
    %909 = vmatpush1.bf16.msra.mxu0 0
    %910 = vmatprep.subr.bf16.mxu0 0
    %911 = vmatpush1.bf16.msra.mxu0 0
    %912 = vmatprep.subr.bf16.mxu0 0
    %913 = vmatpush1.bf16.msra.mxu0 0
    %914 = vmatprep.subr.bf16.mxu0 0
    %915 = vmatpush1.bf16.msra.mxu0 0
    %916 = vmatprep.mubr.bf16.mxu0 0
    %917 = vmatmul.mubr.bf16.gmra.mrb[0].mxu0 %v879
    %v918 = vpop.f32.mrb[0].mxu0
    %v919 = vadd.f32 0.0, %v918
    %v920 = vpop.f32.mrb[0].mxu0
    %v921 = vpop.f32.mrb[0].mxu0
    %v922 = vadd.f32 0.0, %v921
    %v923 = vpop.f32.mrb[0].mxu0
    %924 = vmatprep.mubr.bf16.mxu0 0
    %925 = vmatmul.mubr.bf16.gmra.mrb[0].mxu0 %v882
    %v926 = vpop.f32.mrb[0].mxu0
    %v927 = vadd.f32 0.0, %v926
    %v928 = vpop.f32.mrb[0].mxu0
    %v929 = vpop.f32.mrb[0].mxu0
    %v930 = vpop.f32.mrb[0].mxu0
    %931 = vdwg.mxu0
    %v932 = vadd.f32 %v837, %v919
    %v933 = vadd.f32 %v838, %v922
    %v934 = vadd.f32 %v839, %v927
    %v935 = vmax.f32 %v932, 0.0
    %v936 = vmax.f32 %v933, 0.0
    %v937 = vmax.f32 %v934, 0.0
    %v938 = vpack.c.bf16 %v936, %v935
    %v939 = vpack.c.bf16 %v937, %v937
    %v940 = vld [vmem:[%s7] sm:$0xf]
    %v941 = vld [vmem:[%s7 + $0x4] sm:$0xf]
    %v942 = vld [vmem:[%s7 + $0x8] sm:$0xf]
    %v946 = vunpack.c.l.b16 %v940
    %v947 = vunpack.c.l.b16 %v941
    %v948 = vunpack.c.l.b16 %v942
    %v949 = vpack.c.b16 %v947, %v946
    %v950 = vpack.c.b16 %v948, %v948
    %vm951 = vcmask 146432
    %v953 = vsel %vm951, %v949, 0
    %v956 = vsel %vm951, %v950, 0
    %v959 = vsel %vm434, %v939, 0
    %961 = vmatprep.subr.bf16.mxu0 0
    %962 = vmatpush1.bf16.msra.mxu0 %v938
    %963 = vmatprep.subr.bf16.mxu0 0
    %964 = vmatpush1.bf16.msra.mxu0 %v959
    %965 = vmatprep.subr.bf16.mxu0 0
    %966 = vmatpush1.bf16.msra.mxu0 0
    %967 = vmatprep.subr.bf16.mxu0 0
    %968 = vmatpush1.bf16.msra.mxu0 0
    %969 = vmatprep.subr.bf16.mxu0 0
    %970 = vmatpush1.bf16.msra.mxu0 0
    %971 = vmatprep.subr.bf16.mxu0 0
    %972 = vmatpush1.bf16.msra.mxu0 0
    %973 = vmatprep.subr.bf16.mxu0 0
    %974 = vmatpush1.bf16.msra.mxu0 0
    %975 = vmatprep.subr.bf16.mxu0 0
    %976 = vmatpush1.bf16.msra.mxu0 0
    %977 = vmatprep.subr.bf16.mxu0 0
    %978 = vmatpush1.bf16.msra.mxu0 0
    %979 = vmatprep.subr.bf16.mxu0 0
    %980 = vmatpush1.bf16.msra.mxu0 0
    %981 = vmatprep.subr.bf16.mxu0 0
    %982 = vmatpush1.bf16.msra.mxu0 0
    %983 = vmatprep.subr.bf16.mxu0 0
    %984 = vmatpush1.bf16.msra.mxu0 0
    %985 = vmatprep.subr.bf16.mxu0 0
    %986 = vmatpush1.bf16.msra.mxu0 0
    %987 = vmatprep.subr.bf16.mxu0 0
    %988 = vmatpush1.bf16.msra.mxu0 0
    %989 = vmatprep.subr.bf16.mxu0 0
    %990 = vmatpush1.bf16.msra.mxu0 0
    %991 = vmatprep.subr.bf16.mxu0 0
    %992 = vmatpush1.bf16.msra.mxu0 0
    %993 = vmatprep.mubr.bf16.mxu0 0
    %994 = vmatmul.mubr.bf16.gmra.mrb[0].mxu0 %v953
    %v995 = vpop.f32.mrb[0].mxu0
    %v996 = vadd.f32 0.0, %v995
    %v997 = vpop.f32.mrb[0].mxu0
    %v998 = vpop.f32.mrb[0].mxu0
    %v999 = vadd.f32 0.0, %v998
    %v1000 = vpop.f32.mrb[0].mxu0
    %1001 = vmatprep.mubr.bf16.mxu0 0
    %1002 = vmatmul.mubr.bf16.gmra.mrb[0].mxu0 %v956
    %v1003 = vpop.f32.mrb[0].mxu0
    %v1004 = vadd.f32 0.0, %v1003
    %v1005 = vpop.f32.mrb[0].mxu0
    %v1006 = vpop.f32.mrb[0].mxu0
    %v1007 = vpop.f32.mrb[0].mxu0
    %1008 = vdwg.mxu0
    %v1011 = vrot.slane %v999, 4
    %v1012 = vrot.slane %v1004, 4
    %v1013 = vsel %vm497, %v1011, %v1012
    %v1016 = vmax.f32 %v996, %v1013
    %v1017 = vmax.f32 %v999, %v1012
    %v1018 = vpack.c.bf16 %v1017, %v1016
    %v1019 = vld [vmem:[%s8] sm:$0xf]
    %v1020 = vld [vmem:[%s8 + $0x4] sm:$0xf]
    %v1021 = vld [vmem:[%s8 + $0x8] sm:$0xf]
    %v1022 = vld [vmem:[%s8 + $0xc] sm:$0xf]
    %v1023 = vld [vmem:[%s8 + $0x10] sm:$0xf]
    %v1024 = vld [vmem:[%s8 + $0x14] sm:$0xf]
    %v1025 = vld [vmem:[%s8 + $0x18] sm:$0xf]
    %v1026 = vld [vmem:[%s8 + $0x1c] sm:$0xf]
    %v1027 = vld [vmem:[%s8 + $0x20] sm:$0xf]
    %v1028 = vld [vmem:[%s8 + $0x24] sm:$0xf]
    %v1029 = vld [vmem:[%s8 + $0x28] sm:$0xf]
    %v1030 = vld [vmem:[%s8 + $0x2c] sm:$0xf]
    %v1031 = vld [vmem:[%s8 + $0x30] sm:$0xf]
    %v1032 = vld [vmem:[%s8 + $0x34] sm:$0xf]
    %v1033 = vld [vmem:[%s8 + $0x38] sm:$0xf]
    %v1034 = vld [vmem:[%s8 + $0x3c] sm:$0xf]
    %v1051 = vunpack.c.l.b16 %v1019
    %v1052 = vunpack.c.l.b16 %v1020
    %v1053 = vunpack.c.l.b16 %v1021
    %v1054 = vunpack.c.l.b16 %v1022
    %v1055 = vunpack.c.l.b16 %v1023
    %v1056 = vunpack.c.l.b16 %v1024
    %v1057 = vunpack.c.l.b16 %v1025
    %v1058 = vunpack.c.l.b16 %v1026
    %v1059 = vunpack.c.l.b16 %v1027
    %v1060 = vunpack.c.l.b16 %v1028
    %v1061 = vunpack.c.l.b16 %v1029
    %v1062 = vunpack.c.l.b16 %v1030
    %v1063 = vunpack.c.l.b16 %v1031
    %v1064 = vunpack.c.l.b16 %v1032
    %v1065 = vunpack.c.l.b16 %v1033
    %v1066 = vunpack.c.l.b16 %v1034
    %v1067 = vpack.c.b16 %v1052, %v1051
    %v1068 = vpack.c.b16 %v1054, %v1053
    %v1069 = vpack.c.b16 %v1056, %v1055
    %v1070 = vpack.c.b16 %v1058, %v1057
    %v1071 = vpack.c.b16 %v1060, %v1059
    %v1072 = vpack.c.b16 %v1062, %v1061
    %v1073 = vpack.c.b16 %v1064, %v1063
    %v1074 = vpack.c.b16 %v1066, %v1065
    %1083 = vmatprep.subr.bf16.mxu0 0
    %1084 = vmatpush1.bf16.msra.mxu0 %v1067
    %1085 = vmatprep.subr.bf16.mxu0 0
    %1086 = vmatpush1.bf16.msra.mxu0 %v1068
    %1087 = vmatprep.subr.bf16.mxu0 0
    %1088 = vmatpush1.bf16.msra.mxu0 %v1069
    %1089 = vmatprep.subr.bf16.mxu0 0
    %1090 = vmatpush1.bf16.msra.mxu0 %v1070
    %1091 = vmatprep.subr.bf16.mxu0 0
    %1092 = vmatpush1.bf16.msra.mxu0 %v1071
    %1093 = vmatprep.subr.bf16.mxu0 0
    %1094 = vmatpush1.bf16.msra.mxu0 %v1072
    %1095 = vmatprep.subr.bf16.mxu0 0
    %1096 = vmatpush1.bf16.msra.mxu0 %v1073
    %1097 = vmatprep.subr.bf16.mxu0 0
    %1098 = vmatpush1.bf16.msra.mxu0 %v1074
    %1099 = vmatprep.subr.bf16.mxu0 0
    %1100 = vmatpush1.bf16.msra.mxu0 0
    %1101 = vmatprep.subr.bf16.mxu0 0
    %1102 = vmatpush1.bf16.msra.mxu0 0
    %1103 = vmatprep.subr.bf16.mxu0 0
    %1104 = vmatpush1.bf16.msra.mxu0 0
    %1105 = vmatprep.subr.bf16.mxu0 0
    %1106 = vmatpush1.bf16.msra.mxu0 0
    %1107 = vmatprep.subr.bf16.mxu0 0
    %1108 = vmatpush1.bf16.msra.mxu0 0
    %1109 = vmatprep.subr.bf16.mxu0 0
    %1110 = vmatpush1.bf16.msra.mxu0 0
    %1111 = vmatprep.subr.bf16.mxu0 0
    %1112 = vmatpush1.bf16.msra.mxu0 0
    %1113 = vmatprep.subr.bf16.mxu0 0
    %1114 = vmatpush1.bf16.msra.mxu0 0
    %1115 = vmatprep.mubr.bf16.mxu0 0
    %1116 = vmatmul.mubr.bf16.gmra.mrb[0].mxu0 %v1018
    %v1117 = vpop.f32.mrb[0].mxu0
    %v1118 = vadd.f32 0.0, %v1117
    %v1119 = vpop.f32.mrb[0].mxu0
    %v1120 = vpop.f32.mrb[0].mxu0
    %v1121 = vadd.f32 0.0, %v1120
    %v1122 = vpop.f32.mrb[0].mxu0
    %1123 = vdwg.mxu0
    %1126 = vrot.lane.b32.xlu0 %v1118, 64
    %v1127 = vpop.permute.xlu0 %1126
    %1128 = vrot.lane.b32.xlu0 %v1121, 64
    %v1129 = vpop.permute.xlu0 %1128
    %v1132 = vmax.f32 %v1118, %v1127
    %v1133 = vmax.f32 %v1121, %v1129
    %v1134 = vld [vmem:[%s10] sm:$0x1]
    %v1135 = vpack.c.bf16 %v1133, %v1132
    %v1136 = vld [vmem:[%s9] sm:$0xf]
    %v1137 = vld [vmem:[%s9 + $0x4] sm:$0xf]
    %v1138 = vld [vmem:[%s9 + $0x8] sm:$0xf]
    %v1139 = vld [vmem:[%s9 + $0xc] sm:$0xf]
    %v1140 = vld [vmem:[%s9 + $0x10] sm:$0xf]
    %v1141 = vld [vmem:[%s9 + $0x14] sm:$0xf]
    %v1142 = vld [vmem:[%s9 + $0x18] sm:$0xf]
    %v1143 = vld [vmem:[%s9 + $0x1c] sm:$0xf]
    %v1152 = vunpack.c.l.b16 %v1136
    %v1153 = vunpack.c.l.b16 %v1137
    %v1154 = vunpack.c.l.b16 %v1138
    %v1155 = vunpack.c.l.b16 %v1139
    %v1156 = vunpack.c.l.b16 %v1140
    %v1157 = vunpack.c.l.b16 %v1141
    %v1158 = vunpack.c.l.b16 %v1142
    %v1159 = vunpack.c.l.b16 %v1143
    %v1160 = vpack.c.b16 %v1153, %v1152
    %v1161 = vpack.c.b16 %v1155, %v1154
    %v1162 = vpack.c.b16 %v1157, %v1156
    %v1163 = vpack.c.b16 %v1159, %v1158
    %v1169 = vsel %vm673, %v1135, 0
    %1171 = vmatprep.subr.bf16.mxu0 0
    %1172 = vmatpush1.bf16.msra.mxu0 %v1160
    %1173 = vmatprep.subr.bf16.mxu0 0
    %1174 = vmatpush1.bf16.msra.mxu0 %v1161
    %1175 = vmatprep.subr.bf16.mxu0 0
    %1176 = vmatpush1.bf16.msra.mxu0 %v1162
    %1177 = vmatprep.subr.bf16.mxu0 0
    %1178 = vmatpush1.bf16.msra.mxu0 %v1163
    %1179 = vmatprep.subr.bf16.mxu0 0
    %1180 = vmatpush1.bf16.msra.mxu0 0
    %1181 = vmatprep.subr.bf16.mxu0 0
    %1182 = vmatpush1.bf16.msra.mxu0 0
    %1183 = vmatprep.subr.bf16.mxu0 0
    %1184 = vmatpush1.bf16.msra.mxu0 0
    %1185 = vmatprep.subr.bf16.mxu0 0
    %1186 = vmatpush1.bf16.msra.mxu0 0
    %1187 = vmatprep.subr.bf16.mxu0 0
    %1188 = vmatpush1.bf16.msra.mxu0 0
    %1189 = vmatprep.subr.bf16.mxu0 0
    %1190 = vmatpush1.bf16.msra.mxu0 0
    %1191 = vmatprep.subr.bf16.mxu0 0
    %1192 = vmatpush1.bf16.msra.mxu0 0
    %1193 = vmatprep.subr.bf16.mxu0 0
    %1194 = vmatpush1.bf16.msra.mxu0 0
    %1195 = vmatprep.subr.bf16.mxu0 0
    %1196 = vmatpush1.bf16.msra.mxu0 0
    %1197 = vmatprep.subr.bf16.mxu0 0
    %1198 = vmatpush1.bf16.msra.mxu0 0
    %1199 = vmatprep.subr.bf16.mxu0 0
    %1200 = vmatpush1.bf16.msra.mxu0 0
    %1201 = vmatprep.subr.bf16.mxu0 0
    %1202 = vmatpush1.bf16.msra.mxu0 0
    %1203 = vmatprep.mubr.bf16.mxu0 0
    %1204 = vmatmul.mubr.bf16.gmra.mrb[0].mxu0 %v1169
    %v1205 = vpop.f32.mrb[0].mxu0
    %v1206 = vadd.f32 0.0, %v1205
    %v1207 = vpop.f32.mrb[0].mxu0
    %v1208 = vpop.f32.mrb[0].mxu0
    %v1209 = vadd.f32 0.0, %v1208
    %v1210 = vpop.f32.mrb[0].mxu0
    %1211 = vdwg.mxu0
    %v1213 = vlaneseq
    %v1214 = vshrl.u32 %v1213, 7
    %v1215 = vsub.s32 0, %v1214
    %v1216 = vrot.slane %v1134, %v1215
    %v1218 = vadd.f32 %v1216, %v1206
    %v1219 = vadd.f32 %v1216, %v1209
    %s1220 = scalar_lea.vmem %s9, 32
    %v1221 = vld [vmem:[%s1220] sm:$0xf]
    %v1222 = vld [vmem:[%s1220 + $0x4] sm:$0xf]
    %v1223 = vld [vmem:[%s1220 + $0x8] sm:$0xf]
    %v1224 = vld [vmem:[%s1220 + $0xc] sm:$0xf]
    %v1225 = vld [vmem:[%s1220 + $0x10] sm:$0xf]
    %v1226 = vld [vmem:[%s1220 + $0x14] sm:$0xf]
    %v1227 = vld [vmem:[%s1220 + $0x18] sm:$0xf]
    %v1228 = vld [vmem:[%s1220 + $0x1c] sm:$0xf]
    %v1229 = vshrl.u32 %v1135, 16
    %v1231 = vshll.u32 %v1135, 16
    %v1233 = vrot.slane %v1231, 1
    %v1234 = vor.u32 %v1229, %v1233
    %v1243 = vunpack.c.l.b16 %v1221
    %v1244 = vunpack.c.l.b16 %v1222
    %v1245 = vunpack.c.l.b16 %v1223
    %v1246 = vunpack.c.l.b16 %v1224
    %v1247 = vunpack.c.l.b16 %v1225
    %v1248 = vunpack.c.l.b16 %v1226
    %v1249 = vunpack.c.l.b16 %v1227
    %v1250 = vunpack.c.l.b16 %v1228
    %v1251 = vpack.c.b16 %v1244, %v1243
    %v1252 = vpack.c.b16 %v1246, %v1245
    %v1253 = vpack.c.b16 %v1248, %v1247
    %v1254 = vpack.c.b16 %v1250, %v1249
    %v1260 = vsel %vm673, %v1234, 0
    %1262 = vmatprep.subr.bf16.mxu0 0
    %1263 = vmatpush1.bf16.msra.mxu0 %v1251
    %1264 = vmatprep.subr.bf16.mxu0 0
    %1265 = vmatpush1.bf16.msra.mxu0 %v1252
    %1266 = vmatprep.subr.bf16.mxu0 0
    %1267 = vmatpush1.bf16.msra.mxu0 %v1253
    %1268 = vmatprep.subr.bf16.mxu0 0
    %1269 = vmatpush1.bf16.msra.mxu0 %v1254
    %1270 = vmatprep.subr.bf16.mxu0 0
    %1271 = vmatpush1.bf16.msra.mxu0 0
    %1272 = vmatprep.subr.bf16.mxu0 0
    %1273 = vmatpush1.bf16.msra.mxu0 0
    %1274 = vmatprep.subr.bf16.mxu0 0
    %1275 = vmatpush1.bf16.msra.mxu0 0
    %1276 = vmatprep.subr.bf16.mxu0 0
    %1277 = vmatpush1.bf16.msra.mxu0 0
    %1278 = vmatprep.subr.bf16.mxu0 0
    %1279 = vmatpush1.bf16.msra.mxu0 0
    %1280 = vmatprep.subr.bf16.mxu0 0
    %1281 = vmatpush1.bf16.msra.mxu0 0
    %1282 = vmatprep.subr.bf16.mxu0 0
    %1283 = vmatpush1.bf16.msra.mxu0 0
    %1284 = vmatprep.subr.bf16.mxu0 0
    %1285 = vmatpush1.bf16.msra.mxu0 0
    %1286 = vmatprep.subr.bf16.mxu0 0
    %1287 = vmatpush1.bf16.msra.mxu0 0
    %1288 = vmatprep.subr.bf16.mxu0 0
    %1289 = vmatpush1.bf16.msra.mxu0 0
    %1290 = vmatprep.subr.bf16.mxu0 0
    %1291 = vmatpush1.bf16.msra.mxu0 0
    %1292 = vmatprep.subr.bf16.mxu0 0
    %1293 = vmatpush1.bf16.msra.mxu0 0
    %1294 = vmatprep.mubr.bf16.mxu0 0
    %1295 = vmatmul.mubr.bf16.gmra.mrb[0].mxu0 %v1260
    %v1296 = vpop.f32.mrb[0].mxu0
    %v1297 = vadd.f32 0.0, %v1296
    %v1298 = vpop.f32.mrb[0].mxu0
    %v1299 = vpop.f32.mrb[0].mxu0
    %v1300 = vadd.f32 0.0, %v1299
    %v1301 = vpop.f32.mrb[0].mxu0
    %1302 = vdwg.mxu0
    %v1303 = vadd.f32 %v1218, %v1297
    %v1304 = vadd.f32 %v1219, %v1300
    %s1305 = scalar_lea.vmem %s9, 64
    %v1306 = vld [vmem:[%s1305] sm:$0xf]
    %v1307 = vld [vmem:[%s1305 + $0x4] sm:$0xf]
    %v1308 = vld [vmem:[%s1305 + $0x8] sm:$0xf]
    %v1309 = vld [vmem:[%s1305 + $0xc] sm:$0xf]
    %v1310 = vld [vmem:[%s1305 + $0x10] sm:$0xf]
    %v1311 = vld [vmem:[%s1305 + $0x14] sm:$0xf]
    %v1312 = vld [vmem:[%s1305 + $0x18] sm:$0xf]
    %v1313 = vld [vmem:[%s1305 + $0x1c] sm:$0xf]
    %v1315 = vrot.slane %v1135, 1
    %v1324 = vunpack.c.l.b16 %v1306
    %v1325 = vunpack.c.l.b16 %v1307
    %v1326 = vunpack.c.l.b16 %v1308
    %v1327 = vunpack.c.l.b16 %v1309
    %v1328 = vunpack.c.l.b16 %v1310
    %v1329 = vunpack.c.l.b16 %v1311
    %v1330 = vunpack.c.l.b16 %v1312
    %v1331 = vunpack.c.l.b16 %v1313
    %v1332 = vpack.c.b16 %v1325, %v1324
    %v1333 = vpack.c.b16 %v1327, %v1326
    %v1334 = vpack.c.b16 %v1329, %v1328
    %v1335 = vpack.c.b16 %v1331, %v1330
    %v1341 = vsel %vm673, %v1315, 0
    %1343 = vmatprep.subr.bf16.mxu0 0
    %1344 = vmatpush1.bf16.msra.mxu0 %v1332
    %1345 = vmatprep.subr.bf16.mxu0 0
    %1346 = vmatpush1.bf16.msra.mxu0 %v1333
    %1347 = vmatprep.subr.bf16.mxu0 0
    %1348 = vmatpush1.bf16.msra.mxu0 %v1334
    %1349 = vmatprep.subr.bf16.mxu0 0
    %1350 = vmatpush1.bf16.msra.mxu0 %v1335
    %1351 = vmatprep.subr.bf16.mxu0 0
    %1352 = vmatpush1.bf16.msra.mxu0 0
    %1353 = vmatprep.subr.bf16.mxu0 0
    %1354 = vmatpush1.bf16.msra.mxu0 0
    %1355 = vmatprep.subr.bf16.mxu0 0
    %1356 = vmatpush1.bf16.msra.mxu0 0
    %1357 = vmatprep.subr.bf16.mxu0 0
    %1358 = vmatpush1.bf16.msra.mxu0 0
    %1359 = vmatprep.subr.bf16.mxu0 0
    %1360 = vmatpush1.bf16.msra.mxu0 0
    %1361 = vmatprep.subr.bf16.mxu0 0
    %1362 = vmatpush1.bf16.msra.mxu0 0
    %1363 = vmatprep.subr.bf16.mxu0 0
    %1364 = vmatpush1.bf16.msra.mxu0 0
    %1365 = vmatprep.subr.bf16.mxu0 0
    %1366 = vmatpush1.bf16.msra.mxu0 0
    %1367 = vmatprep.subr.bf16.mxu0 0
    %1368 = vmatpush1.bf16.msra.mxu0 0
    %1369 = vmatprep.subr.bf16.mxu0 0
    %1370 = vmatpush1.bf16.msra.mxu0 0
    %1371 = vmatprep.subr.bf16.mxu0 0
    %1372 = vmatpush1.bf16.msra.mxu0 0
    %1373 = vmatprep.subr.bf16.mxu0 0
    %1374 = vmatpush1.bf16.msra.mxu0 0
    %1375 = vmatprep.mubr.bf16.mxu0 0
    %1376 = vmatmul.mubr.bf16.gmra.mrb[0].mxu0 %v1341
    %v1377 = vpop.f32.mrb[0].mxu0
    %v1378 = vadd.f32 0.0, %v1377
    %v1379 = vpop.f32.mrb[0].mxu0
    %v1380 = vpop.f32.mrb[0].mxu0
    %v1381 = vadd.f32 0.0, %v1380
    %v1382 = vpop.f32.mrb[0].mxu0
    %1383 = vdwg.mxu0
    %v1384 = vadd.f32 %v1303, %v1378
    %v1385 = vadd.f32 %v1304, %v1381
    %v1386 = vmax.f32 %v1384, 0.0
    %v1387 = vmax.f32 %v1385, 0.0
    %v1388 = vpack.c.bf16 %v1387, %v1386
    %v1389 = vld [vmem:[%s11] sm:$0xf]
    %vm1390 = vcmask 80896
    %v1392 = vsel %vm1390, %v1389, 0
    %vm1394 = vcmask 1044480
    %v1396 = vsel %vm1394, %v1388, 0
    %1398 = vmatprep.subr.bf16.mxu0 0
    %1399 = vmatpush1.bf16.msra.mxu0 %v1396
    %1400 = vmatprep.subr.bf16.mxu0 0
    %1401 = vmatpush1.bf16.msra.mxu0 0
    %1402 = vmatprep.subr.bf16.mxu0 0
    %1403 = vmatpush1.bf16.msra.mxu0 0
    %1404 = vmatprep.subr.bf16.mxu0 0
    %1405 = vmatpush1.bf16.msra.mxu0 0
    %1406 = vmatprep.subr.bf16.mxu0 0
    %1407 = vmatpush1.bf16.msra.mxu0 0
    %1408 = vmatprep.subr.bf16.mxu0 0
    %1409 = vmatpush1.bf16.msra.mxu0 0
    %1410 = vmatprep.subr.bf16.mxu0 0
    %1411 = vmatpush1.bf16.msra.mxu0 0
    %1412 = vmatprep.subr.bf16.mxu0 0
    %1413 = vmatpush1.bf16.msra.mxu0 0
    %1414 = vmatprep.subr.bf16.mxu0 0
    %1415 = vmatpush1.bf16.msra.mxu0 0
    %1416 = vmatprep.subr.bf16.mxu0 0
    %1417 = vmatpush1.bf16.msra.mxu0 0
    %1418 = vmatprep.subr.bf16.mxu0 0
    %1419 = vmatpush1.bf16.msra.mxu0 0
    %1420 = vmatprep.subr.bf16.mxu0 0
    %1421 = vmatpush1.bf16.msra.mxu0 0
    %1422 = vmatprep.subr.bf16.mxu0 0
    %1423 = vmatpush1.bf16.msra.mxu0 0
    %1424 = vmatprep.subr.bf16.mxu0 0
    %1425 = vmatpush1.bf16.msra.mxu0 0
    %1426 = vmatprep.subr.bf16.mxu0 0
    %1427 = vmatpush1.bf16.msra.mxu0 0
    %1428 = vmatprep.subr.bf16.mxu0 0
    %1429 = vmatpush1.bf16.msra.mxu0 0
    %1430 = vmatprep.mubr.bf16.mxu0 0
    %1431 = vmatmul.mubr.bf16.gmra.mrb[0].mxu0 %v1392
    %v1432 = vpop.f32.mrb[0].mxu0
    %v1433 = vadd.f32 0.0, %v1432
    %v1434 = vpop.f32.mrb[0].mxu0
    %v1435 = vpop.f32.mrb[0].mxu0
    %v1436 = vpop.f32.mrb[0].mxu0
    %1437 = vdwg.mxu0
    %v1439 = vrot.slane %v1433, 4
    %v1441 = vmax.f32 %v1433, %v1439
    %v1442 = vpack.c.bf16 %v1441, %v1441
    %v1443 = vld [vmem:[%s12] sm:$0xf]
    %v1444 = vld [vmem:[%s12 + $0x4] sm:$0xf]
    %v1445 = vld [vmem:[%s12 + $0x8] sm:$0xf]
    %v1446 = vld [vmem:[%s12 + $0xc] sm:$0xf]
    %v1447 = vld [vmem:[%s12 + $0x10] sm:$0xf]
    %v1448 = vld [vmem:[%s12 + $0x14] sm:$0xf]
    %v1449 = vld [vmem:[%s12 + $0x18] sm:$0xf]
    %v1450 = vld [vmem:[%s12 + $0x1c] sm:$0xf]
    %v1451 = vld [vmem:[%s12 + $0x20] sm:$0xf]
    %v1452 = vld [vmem:[%s12 + $0x24] sm:$0xf]
    %v1453 = vld [vmem:[%s12 + $0x28] sm:$0xf]
    %v1454 = vld [vmem:[%s12 + $0x2c] sm:$0xf]
    %v1455 = vld [vmem:[%s12 + $0x30] sm:$0xf]
    %v1456 = vld [vmem:[%s12 + $0x34] sm:$0xf]
    %v1457 = vld [vmem:[%s12 + $0x38] sm:$0xf]
    %v1458 = vld [vmem:[%s12 + $0x3c] sm:$0xf]
    %v1475 = vunpack.c.l.b16 %v1443
    %v1476 = vunpack.c.l.b16 %v1444
    %v1477 = vunpack.c.l.b16 %v1445
    %v1478 = vunpack.c.l.b16 %v1446
    %v1479 = vunpack.c.l.b16 %v1447
    %v1480 = vunpack.c.l.b16 %v1448
    %v1481 = vunpack.c.l.b16 %v1449
    %v1482 = vunpack.c.l.b16 %v1450
    %v1483 = vunpack.c.l.b16 %v1451
    %v1484 = vunpack.c.l.b16 %v1452
    %v1485 = vunpack.c.l.b16 %v1453
    %v1486 = vunpack.c.l.b16 %v1454
    %v1487 = vunpack.c.l.b16 %v1455
    %v1488 = vunpack.c.l.b16 %v1456
    %v1489 = vunpack.c.l.b16 %v1457
    %v1490 = vunpack.c.l.b16 %v1458
    %v1491 = vpack.c.b16 %v1476, %v1475
    %v1492 = vpack.c.b16 %v1478, %v1477
    %v1493 = vpack.c.b16 %v1480, %v1479
    %v1494 = vpack.c.b16 %v1482, %v1481
    %v1495 = vpack.c.b16 %v1484, %v1483
    %v1496 = vpack.c.b16 %v1486, %v1485
    %v1497 = vpack.c.b16 %v1488, %v1487
    %v1498 = vpack.c.b16 %v1490, %v1489
    %1507 = vmatprep.subr.bf16.mxu0 0
    %1508 = vmatpush1.bf16.msra.mxu0 %v1491
    %1509 = vmatprep.subr.bf16.mxu0 0
    %1510 = vmatpush1.bf16.msra.mxu0 %v1492
    %1511 = vmatprep.subr.bf16.mxu0 0
    %1512 = vmatpush1.bf16.msra.mxu0 %v1493
    %1513 = vmatprep.subr.bf16.mxu0 0
    %1514 = vmatpush1.bf16.msra.mxu0 %v1494
    %1515 = vmatprep.subr.bf16.mxu0 0
    %1516 = vmatpush1.bf16.msra.mxu0 %v1495
    %1517 = vmatprep.subr.bf16.mxu0 0
    %1518 = vmatpush1.bf16.msra.mxu0 %v1496
    %1519 = vmatprep.subr.bf16.mxu0 0
    %1520 = vmatpush1.bf16.msra.mxu0 %v1497
    %1521 = vmatprep.subr.bf16.mxu0 0
    %1522 = vmatpush1.bf16.msra.mxu0 %v1498
    %1523 = vmatprep.subr.bf16.mxu0 0
    %1524 = vmatpush1.bf16.msra.mxu0 0
    %1525 = vmatprep.subr.bf16.mxu0 0
    %1526 = vmatpush1.bf16.msra.mxu0 0
    %1527 = vmatprep.subr.bf16.mxu0 0
    %1528 = vmatpush1.bf16.msra.mxu0 0
    %1529 = vmatprep.subr.bf16.mxu0 0
    %1530 = vmatpush1.bf16.msra.mxu0 0
    %1531 = vmatprep.subr.bf16.mxu0 0
    %1532 = vmatpush1.bf16.msra.mxu0 0
    %1533 = vmatprep.subr.bf16.mxu0 0
    %1534 = vmatpush1.bf16.msra.mxu0 0
    %1535 = vmatprep.subr.bf16.mxu0 0
    %1536 = vmatpush1.bf16.msra.mxu0 0
    %1537 = vmatprep.subr.bf16.mxu0 0
    %1538 = vmatpush1.bf16.msra.mxu0 0
    %1539 = vmatprep.mubr.bf16.mxu0 0
    %1540 = vmatmul.mubr.bf16.gmra.mrb[0].mxu0 %v1442
    %v1541 = vpop.f32.mrb[0].mxu0
    %v1542 = vadd.f32 0.0, %v1541
    %v1543 = vpop.f32.mrb[0].mxu0
    %v1544 = vpop.f32.mrb[0].mxu0
    %v1545 = vpop.f32.mrb[0].mxu0
    %1546 = vdwg.mxu0
    %1548 = vrot.lane.b32.xlu0 %v1542, 64
    %v1549 = vpop.permute.xlu0 %1548
    %v1551 = vmax.f32 %v1542, %v1549
    %v1552 = vld [vmem:[%s14] sm:$0x1]
    %v1553 = vpack.c.bf16 %v1551, %v1551
    %v1554 = vld [vmem:[%s13] sm:$0xf]
    %v1555 = vld [vmem:[%s13 + $0x4] sm:$0xf]
    %v1556 = vld [vmem:[%s13 + $0x8] sm:$0xf]
    %v1557 = vld [vmem:[%s13 + $0xc] sm:$0xf]
    %v1558 = vld [vmem:[%s13 + $0x10] sm:$0xf]
    %v1559 = vld [vmem:[%s13 + $0x14] sm:$0xf]
    %v1560 = vld [vmem:[%s13 + $0x18] sm:$0xf]
    %v1561 = vld [vmem:[%s13 + $0x1c] sm:$0xf]
    %v1570 = vunpack.c.l.b16 %v1554
    %v1571 = vunpack.c.l.b16 %v1555
    %v1572 = vunpack.c.l.b16 %v1556
    %v1573 = vunpack.c.l.b16 %v1557
    %v1574 = vunpack.c.l.b16 %v1558
    %v1575 = vunpack.c.l.b16 %v1559
    %v1576 = vunpack.c.l.b16 %v1560
    %v1577 = vunpack.c.l.b16 %v1561
    %v1578 = vpack.c.b16 %v1571, %v1570
    %v1579 = vpack.c.b16 %v1573, %v1572
    %v1580 = vpack.c.b16 %v1575, %v1574
    %v1581 = vpack.c.b16 %v1577, %v1576
    %v1587 = vsel %vm673, %v1553, 0
    %1589 = vmatprep.subr.bf16.mxu0 0
    %1590 = vmatpush1.bf16.msra.mxu0 %v1578
    %1591 = vmatprep.subr.bf16.mxu0 0
    %1592 = vmatpush1.bf16.msra.mxu0 %v1579
    %1593 = vmatprep.subr.bf16.mxu0 0
    %1594 = vmatpush1.bf16.msra.mxu0 %v1580
    %1595 = vmatprep.subr.bf16.mxu0 0
    %1596 = vmatpush1.bf16.msra.mxu0 %v1581
    %1597 = vmatprep.subr.bf16.mxu0 0
    %1598 = vmatpush1.bf16.msra.mxu0 0
    %1599 = vmatprep.subr.bf16.mxu0 0
    %1600 = vmatpush1.bf16.msra.mxu0 0
    %1601 = vmatprep.subr.bf16.mxu0 0
    %1602 = vmatpush1.bf16.msra.mxu0 0
    %1603 = vmatprep.subr.bf16.mxu0 0
    %1604 = vmatpush1.bf16.msra.mxu0 0
    %1605 = vmatprep.subr.bf16.mxu0 0
    %1606 = vmatpush1.bf16.msra.mxu0 0
    %1607 = vmatprep.subr.bf16.mxu0 0
    %1608 = vmatpush1.bf16.msra.mxu0 0
    %1609 = vmatprep.subr.bf16.mxu0 0
    %1610 = vmatpush1.bf16.msra.mxu0 0
    %1611 = vmatprep.subr.bf16.mxu0 0
    %1612 = vmatpush1.bf16.msra.mxu0 0
    %1613 = vmatprep.subr.bf16.mxu0 0
    %1614 = vmatpush1.bf16.msra.mxu0 0
    %1615 = vmatprep.subr.bf16.mxu0 0
    %1616 = vmatpush1.bf16.msra.mxu0 0
    %1617 = vmatprep.subr.bf16.mxu0 0
    %1618 = vmatpush1.bf16.msra.mxu0 0
    %1619 = vmatprep.subr.bf16.mxu0 0
    %1620 = vmatpush1.bf16.msra.mxu0 0
    %1621 = vmatprep.mubr.bf16.mxu0 0
    %1622 = vmatmul.mubr.bf16.gmra.mrb[0].mxu0 %v1587
    %v1623 = vpop.f32.mrb[0].mxu0
    %v1624 = vadd.f32 0.0, %v1623
    %v1625 = vpop.f32.mrb[0].mxu0
    %v1626 = vpop.f32.mrb[0].mxu0
    %v1627 = vpop.f32.mrb[0].mxu0
    %1628 = vdwg.mxu0
    %v1630 = vlaneseq
    %v1631 = vshrl.u32 %v1630, 7
    %v1632 = vsub.s32 0, %v1631
    %v1633 = vrot.slane %v1552, %v1632
    %v1635 = vadd.f32 %v1633, %v1624
    %v1636 = vld [vmem:[%s13 + $0x20] sm:$0xf]
    %v1637 = vld [vmem:[%s13 + $0x24] sm:$0xf]
    %v1638 = vld [vmem:[%s13 + $0x28] sm:$0xf]
    %v1639 = vld [vmem:[%s13 + $0x2c] sm:$0xf]
    %v1640 = vld [vmem:[%s13 + $0x30] sm:$0xf]
    %v1641 = vld [vmem:[%s13 + $0x34] sm:$0xf]
    %v1642 = vld [vmem:[%s13 + $0x38] sm:$0xf]
    %v1643 = vld [vmem:[%s13 + $0x3c] sm:$0xf]
    %v1645 = vrot.slane %v1553, 1
    %v1654 = vunpack.c.l.b16 %v1636
    %v1655 = vunpack.c.l.b16 %v1637
    %v1656 = vunpack.c.l.b16 %v1638
    %v1657 = vunpack.c.l.b16 %v1639
    %v1658 = vunpack.c.l.b16 %v1640
    %v1659 = vunpack.c.l.b16 %v1641
    %v1660 = vunpack.c.l.b16 %v1642
    %v1661 = vunpack.c.l.b16 %v1643
    %v1662 = vpack.c.b16 %v1655, %v1654
    %v1663 = vpack.c.b16 %v1657, %v1656
    %v1664 = vpack.c.b16 %v1659, %v1658
    %v1665 = vpack.c.b16 %v1661, %v1660
    %v1671 = vsel %vm673, %v1645, 0
    %1673 = vmatprep.subr.bf16.mxu0 0
    %1674 = vmatpush1.bf16.msra.mxu0 %v1662
    %1675 = vmatprep.subr.bf16.mxu0 0
    %1676 = vmatpush1.bf16.msra.mxu0 %v1663
    %1677 = vmatprep.subr.bf16.mxu0 0
    %1678 = vmatpush1.bf16.msra.mxu0 %v1664
    %1679 = vmatprep.subr.bf16.mxu0 0
    %1680 = vmatpush1.bf16.msra.mxu0 %v1665
    %1681 = vmatprep.subr.bf16.mxu0 0
    %1682 = vmatpush1.bf16.msra.mxu0 0
    %1683 = vmatprep.subr.bf16.mxu0 0
    %1684 = vmatpush1.bf16.msra.mxu0 0
    %1685 = vmatprep.subr.bf16.mxu0 0
    %1686 = vmatpush1.bf16.msra.mxu0 0
    %1687 = vmatprep.subr.bf16.mxu0 0
    %1688 = vmatpush1.bf16.msra.mxu0 0
    %1689 = vmatprep.subr.bf16.mxu0 0
    %1690 = vmatpush1.bf16.msra.mxu0 0
    %1691 = vmatprep.subr.bf16.mxu0 0
    %1692 = vmatpush1.bf16.msra.mxu0 0
    %1693 = vmatprep.subr.bf16.mxu0 0
    %1694 = vmatpush1.bf16.msra.mxu0 0
    %1695 = vmatprep.subr.bf16.mxu0 0
    %1696 = vmatpush1.bf16.msra.mxu0 0
    %1697 = vmatprep.subr.bf16.mxu0 0
    %1698 = vmatpush1.bf16.msra.mxu0 0
    %1699 = vmatprep.subr.bf16.mxu0 0
    %1700 = vmatpush1.bf16.msra.mxu0 0
    %1701 = vmatprep.subr.bf16.mxu0 0
    %1702 = vmatpush1.bf16.msra.mxu0 0
    %1703 = vmatprep.subr.bf16.mxu0 0
    %1704 = vmatpush1.bf16.msra.mxu0 0
    %1705 = vmatprep.mubr.bf16.mxu0 0
    %1706 = vmatmul.mubr.bf16.gmra.mrb[0].mxu0 %v1671
    %v1707 = vpop.f32.mrb[0].mxu0
    %v1708 = vadd.f32 0.0, %v1707
    %v1709 = vpop.f32.mrb[0].mxu0
    %v1710 = vpop.f32.mrb[0].mxu0
    %v1711 = vpop.f32.mrb[0].mxu0
    %1712 = vdwg.mxu0
    %v1713 = vadd.f32 %v1635, %v1708
    %v1714 = vmax.f32 %v1713, 0.0
    %v1715 = vpack.c.bf16 %v1714, %v1714
    %v1716 = vld [vmem:[%s15] sm:$0xf]
    %v1717 = vld [vmem:[%s15 + $0x4] sm:$0xf]
    %v1718 = vld [vmem:[%s15 + $0x8] sm:$0xf]
    %v1719 = vld [vmem:[%s15 + $0xc] sm:$0xf]
    %v1720 = vld [vmem:[%s15 + $0x10] sm:$0xf]
    %v1721 = vld [vmem:[%s15 + $0x14] sm:$0xf]
    %v1722 = vld [vmem:[%s15 + $0x18] sm:$0xf]
    %v1723 = vld [vmem:[%s15 + $0x1c] sm:$0xf]
    %v1724 = vld [vmem:[%s16] sm:$0x1]
    %v1726 = vlaneseq
    %v1727 = vshrl.u32 %v1726, 7
    %v1728 = vsub.s32 0, %v1727
    %v1729 = vrot.slane %v1724, %v1728
    %v1739 = vunpack.c.l.b16 %v1716
    %v1740 = vunpack.c.l.b16 %v1717
    %v1741 = vunpack.c.l.b16 %v1718
    %v1742 = vunpack.c.l.b16 %v1719
    %v1743 = vunpack.c.l.b16 %v1720
    %v1744 = vunpack.c.l.b16 %v1721
    %v1745 = vunpack.c.l.b16 %v1722
    %v1746 = vunpack.c.l.b16 %v1723
    %v1747 = vpack.c.b16 %v1740, %v1739
    %v1748 = vpack.c.b16 %v1742, %v1741
    %v1749 = vpack.c.b16 %v1744, %v1743
    %v1750 = vpack.c.b16 %v1746, %v1745
    %v1756 = vsel %vm673, %v1715, 0
    %1758 = vmatprep.subr.bf16.mxu0 0
    %1759 = vmatpush1.bf16.msra.mxu0 %v1747
    %1760 = vmatprep.subr.bf16.mxu0 0
    %1761 = vmatpush1.bf16.msra.mxu0 %v1748
    %1762 = vmatprep.subr.bf16.mxu0 0
    %1763 = vmatpush1.bf16.msra.mxu0 %v1749
    %1764 = vmatprep.subr.bf16.mxu0 0
    %1765 = vmatpush1.bf16.msra.mxu0 %v1750
    %1766 = vmatprep.subr.bf16.mxu0 0
    %1767 = vmatpush1.bf16.msra.mxu0 0
    %1768 = vmatprep.subr.bf16.mxu0 0
    %1769 = vmatpush1.bf16.msra.mxu0 0
    %1770 = vmatprep.subr.bf16.mxu0 0
    %1771 = vmatpush1.bf16.msra.mxu0 0
    %1772 = vmatprep.subr.bf16.mxu0 0
    %1773 = vmatpush1.bf16.msra.mxu0 0
    %1774 = vmatprep.subr.bf16.mxu0 0
    %1775 = vmatpush1.bf16.msra.mxu0 0
    %1776 = vmatprep.subr.bf16.mxu0 0
    %1777 = vmatpush1.bf16.msra.mxu0 0
    %1778 = vmatprep.subr.bf16.mxu0 0
    %1779 = vmatpush1.bf16.msra.mxu0 0
    %1780 = vmatprep.subr.bf16.mxu0 0
    %1781 = vmatpush1.bf16.msra.mxu0 0
    %1782 = vmatprep.subr.bf16.mxu0 0
    %1783 = vmatpush1.bf16.msra.mxu0 0
    %1784 = vmatprep.subr.bf16.mxu0 0
    %1785 = vmatpush1.bf16.msra.mxu0 0
    %1786 = vmatprep.subr.bf16.mxu0 0
    %1787 = vmatpush1.bf16.msra.mxu0 0
    %1788 = vmatprep.subr.bf16.mxu0 0
    %1789 = vmatpush1.bf16.msra.mxu0 0
    %1790 = vmatprep.mubr.bf16.mxu0 0
    %1791 = vmatmul.mubr.bf16.gmra.mrb[0].mxu0 %v1756
    %v1792 = vpop.f32.mrb[0].mxu0
    %v1793 = vadd.f32 %v1729, %v1792
    %v1794 = vpop.f32.mrb[0].mxu0
    %v1795 = vpop.f32.mrb[0].mxu0
    %v1796 = vpop.f32.mrb[0].mxu0
    %1797 = vdwg.mxu0
    %v1798 = vmax.f32 %v1793, 0.0
    %vm1799 = vcmask 517120
    %1800 = vst.msk [vmem:[#allocation2] sm:$0x3] %vm1799, %v1798
    %v1801 = vpack.c.bf16 %v1798, %v1798
    %v1802 = vld [vmem:[%s17] sm:$0xf]
    %v1803 = vld [vmem:[%s17 + $0x4] sm:$0xf]
    %v1804 = vld [vmem:[%s17 + $0x8] sm:$0xf]
    %v1805 = vld [vmem:[%s17 + $0xc] sm:$0xf]
    %v1806 = vld [vmem:[%s17 + $0x10] sm:$0xf]
    %v1807 = vld [vmem:[%s17 + $0x14] sm:$0xf]
    %v1808 = vld [vmem:[%s17 + $0x18] sm:$0xf]
    %v1809 = vld [vmem:[%s17 + $0x1c] sm:$0xf]
    %v1810 = vld [vmem:[%s18] sm:$0x1]
    %v1812 = vlaneseq
    %v1813 = vshrl.u32 %v1812, 7
    %v1814 = vsub.s32 0, %v1813
    %v1815 = vrot.slane %v1810, %v1814
    %v1825 = vunpack.c.l.b16 %v1802
    %v1826 = vunpack.c.l.b16 %v1803
    %v1827 = vunpack.c.l.b16 %v1804
    %v1828 = vunpack.c.l.b16 %v1805
    %v1829 = vunpack.c.l.b16 %v1806
    %v1830 = vunpack.c.l.b16 %v1807
    %v1831 = vunpack.c.l.b16 %v1808
    %v1832 = vunpack.c.l.b16 %v1809
    %v1833 = vpack.c.b16 %v1826, %v1825
    %v1834 = vpack.c.b16 %v1828, %v1827
    %v1835 = vpack.c.b16 %v1830, %v1829
    %v1836 = vpack.c.b16 %v1832, %v1831
    %v1842 = vsel %vm673, %v1801, 0
    %1844 = vmatprep.subr.bf16.mxu0 0
    %1845 = vmatpush1.bf16.msra.mxu0 %v1833
    %1846 = vmatprep.subr.bf16.mxu0 0
    %1847 = vmatpush1.bf16.msra.mxu0 %v1834
    %1848 = vmatprep.subr.bf16.mxu0 0
    %1849 = vmatpush1.bf16.msra.mxu0 %v1835
    %1850 = vmatprep.subr.bf16.mxu0 0
    %1851 = vmatpush1.bf16.msra.mxu0 %v1836
    %1852 = vmatprep.subr.bf16.mxu0 0
    %1853 = vmatpush1.bf16.msra.mxu0 0
    %1854 = vmatprep.subr.bf16.mxu0 0
    %1855 = vmatpush1.bf16.msra.mxu0 0
    %1856 = vmatprep.subr.bf16.mxu0 0
    %1857 = vmatpush1.bf16.msra.mxu0 0
    %1858 = vmatprep.subr.bf16.mxu0 0
    %1859 = vmatpush1.bf16.msra.mxu0 0
    %1860 = vmatprep.subr.bf16.mxu0 0
    %1861 = vmatpush1.bf16.msra.mxu0 0
    %1862 = vmatprep.subr.bf16.mxu0 0
    %1863 = vmatpush1.bf16.msra.mxu0 0
    %1864 = vmatprep.subr.bf16.mxu0 0
    %1865 = vmatpush1.bf16.msra.mxu0 0
    %1866 = vmatprep.subr.bf16.mxu0 0
    %1867 = vmatpush1.bf16.msra.mxu0 0
    %1868 = vmatprep.subr.bf16.mxu0 0
    %1869 = vmatpush1.bf16.msra.mxu0 0
    %1870 = vmatprep.subr.bf16.mxu0 0
    %1871 = vmatpush1.bf16.msra.mxu0 0
    %1872 = vmatprep.subr.bf16.mxu0 0
    %1873 = vmatpush1.bf16.msra.mxu0 0
    %1874 = vmatprep.subr.bf16.mxu0 0
    %1875 = vmatpush1.bf16.msra.mxu0 0
    %1876 = vmatprep.mubr.bf16.mxu0 0
    %1877 = vmatmul.mubr.bf16.gmra.mrb[0].mxu0 %v1842
    %v1878 = vpop.f32.mrb[0].mxu0
    %v1879 = vadd.f32 %v1815, %v1878
    %v1880 = vpop.f32.mrb[0].mxu0
    %v1881 = vpop.f32.mrb[0].mxu0
    %v1882 = vpop.f32.mrb[0].mxu0
    %1883 = vdwg.mxu0
    %vm1884 = vcmask 123904
    %1885 = vst.msk [vmem:[#allocation4] sm:$0x3] %vm1884, %v1879
    %v1886 = vlaneseq
    %v1887 = vshrl.u32 %v1886, 7
    %v1888 = vlaneseq
    %v1889 = vshrl.u32 %v1888, 7
    %v1890 = vsub.s32 0, %v1889
    %v1891 = vrot.slane %v1879, %v1890
    %vm1892 = vcmp.gt.f32.partialorder %v1891, %v1879
    %vm1893 = vcmp.eq.f32.partialorder %v1891, %v1879
    %vm1894 = vcmp.gt.s32.totalorder %v1887, 0
    %vm1895 = vmand %vm1893, %vm1894
    %vm1896 = vmor %vm1892, %vm1895
    %v1897 = vsel %vm1896, 1, 0
    %v1898 = vlaneseq
    %v1899 = vshrl.u32 %v1898, 7
    %v1900 = vsub.s32 1, %v1899
    %v1901 = vrot.slane %v1879, %v1900
    %vm1902 = vcmp.gt.f32.partialorder %v1901, %v1879
    %vm1903 = vcmp.eq.f32.partialorder %v1901, %v1879
    %vm1904 = vcmp.gt.s32.totalorder %v1887, 1
    %vm1905 = vmand %vm1903, %vm1904
    %vm1906 = vmor %vm1902, %vm1905
    %v1907 = vsel %vm1906, 1, 0
    %v1908 = vadd.s32 %v1897, %v1907
    %vm1909 = vcmp.lt.s32.totalorder %v1908, 1
    %v1910 = vsel %vm1909, 1.0, -1.0
    %1911 = vst.msk [vmem:[#allocation6] sm:$0x3] %vm1884, %v1910
    // Predicated region
    $region78: #{cnn_forward.1} parent=1 // pred_check
      _
    $region79: #{cnn_forward.1} parent=1 // pred_check_branch
      %1913 = sbr.rel (0) target = $region81
    $region80: #{cnn_forward.1} parent=1 // pred_region
      %s1915 = ssub.s32 32, 32
      %1916 = vsyncadd [#allocation3], %s1915
      %s1918 = sshll.u32 [#allocation2], 4
      %s1919 = int_to_ptr.vmem [resolvable:$true] %s1918
      %1921 = dma.vmem_to_hbm [thread:$0]  %s1919, 32, %s19, [#allocation3]
    $region81: #{cnn_forward.1} parent=1 // pred_fallthru
      _
    // Predicated region
    $region82: #{cnn_forward.1} parent=1 // pred_check
      _
    $region83: #{cnn_forward.1} parent=1 // pred_check_branch
      %1923 = sbr.rel (0) target = $region85
    $region84: #{cnn_forward.1} parent=1 // pred_region
      %s1925 = ssub.s32 32, 32
      %1926 = vsyncadd [#allocation5], %s1925
      %s1928 = sshll.u32 [#allocation4], 4
      %s1929 = int_to_ptr.vmem [resolvable:$true] %s1928
      %1931 = dma.vmem_to_hbm [thread:$0]  %s1929, 32, %s20, [#allocation5]
    $region85: #{cnn_forward.1} parent=1 // pred_fallthru
      _
    // Predicated region
    $region86: #{cnn_forward.1} parent=1 // pred_check
      _
    $region87: #{cnn_forward.1} parent=1 // pred_check_branch
      %1933 = sbr.rel (0) target = $region89
    $region88: #{cnn_forward.1} parent=1 // pred_region
      %s1935 = ssub.s32 32, 32
      %1936 = vsyncadd [#allocation5], %s1935
      %s1938 = sshll.u32 [#allocation6], 4
      %s1939 = int_to_ptr.vmem [resolvable:$true] %s1938
      %1941 = dma.vmem_to_hbm [thread:$0]  %s1939, 32, %s21, [#allocation5]
    $region89: #{cnn_forward.1} parent=1 // pred_fallthru
      _
    // Predicated region
    $region90: #{cnn_forward.1} parent=1 // pred_check
      _
    $region91: #{cnn_forward.1} parent=1 // pred_check_branch
      %1943 = sbr.rel (0) target = $region93
    $region92: #{cnn_forward.1} parent=1 // pred_region
      %1944 = dma.done [#allocation3], 32
    $region93: #{cnn_forward.1} parent=1 // pred_fallthru
      _
    // Predicated region
    $region94: #{cnn_forward.1} parent=1 // pred_check
      _
    $region95: #{cnn_forward.1} parent=1 // pred_check_branch
      %1946 = sbr.rel (0) target = $region97
    $region96: #{cnn_forward.1} parent=1 // pred_region
      %1947 = dma.done [#allocation5], 32
    $region97: #{cnn_forward.1} parent=1 // pred_fallthru
      _
    // Predicated region
    $region98: #{cnn_forward.1} parent=1 // pred_check
      _
    $region99: #{cnn_forward.1} parent=1 // pred_check_branch
      %1949 = sbr.rel (0) target = $region101
    $region100: #{cnn_forward.1} parent=1 // pred_region
      %1950 = dma.done [#allocation5], 32
    $region101: #{cnn_forward.1} parent=1 // pred_fallthru
      _
    %1951 = vsyncpa [#allocation3], 1
    %1952 = vsyncpa [#allocation5], 1

</llo_original>
